<compile_context>
chip_gen: v6e
topology: v6e:2x2x1
jax: 0.10.0
libtpu: 0.0.40
codegen_flags: <defaults>
</compile_context>

<pallas_src>
import math
from functools import partial

import jax
import jax.numpy as jnp
from jax import lax
from jax.experimental import pallas as pl
from jax.experimental.pallas import tpu as pltpu


# ---------------------------------------------------------------------------
# Pallas kernel: flash-style shared-QK attention, heads batched per grid step.
# ---------------------------------------------------------------------------
def _shared_qk_attn_kernel(q_ref, k_ref, v_ref, o_ref, m_ref, l_ref, acc_ref,
                           *, causal):
    # q_ref: (1, H, tq, Dh)  k_ref, v_ref: (1, H, tk, Dh)  o_ref: (1, H, tq, Dh)
    # m_ref, l_ref: (H, tq, 1) f32     acc_ref: (H, tq, Dh) f32
    j = pl.program_id(2)

    @pl.when(j == 0)
    def _init():
        m_ref[...] = jnp.full(m_ref.shape, -jnp.inf, m_ref.dtype)
        l_ref[...] = jnp.zeros_like(l_ref)
        acc_ref[...] = jnp.zeros_like(acc_ref)

    q = q_ref[0]                      # (H, tq, Dh) bf16, already scaled by Dh**-0.5
    k = k_ref[0]                      # (H, tk, Dh) bf16, already l2-normalized
    v = v_ref[0]                      # (H, tk, Dh) bf16
    tq, tk = q.shape[1], k.shape[1]

    # Head-batched QK^T: contract last dims, batch over heads (no explicit .T).
    s = lax.dot_general(q, k, (((2,), (2,)), ((0,), (0,))),
                        preferred_element_type=jnp.float32)        # (H, tq, tk) f32

    # Shared-QK self-attention mask (global i == j), broadcast across heads.
    row = pl.program_id(1) * tq + lax.broadcasted_iota(jnp.int32, (tq, tk), 0)
    col = j * tk + lax.broadcasted_iota(jnp.int32, (tq, tk), 1)
    s = jnp.where((row == col)[None], -5e4, s)      # TOKEN_SELF_ATTN_VALUE
    if causal:
        s = jnp.where((col > row)[None], -1e9, s)   # finite: no NaN in online max

    # Online softmax (f32 state).
    m_prev = m_ref[...]                                             # (H, tq, 1)
    m_new = jnp.maximum(m_prev, jnp.max(s, axis=-1, keepdims=True))
    alpha = jnp.exp(m_prev - m_new)
    p = jnp.exp(s - m_new)                                          # (H, tq, tk) f32
    l_ref[...] = alpha * l_ref[...] + jnp.sum(p, axis=-1, keepdims=True)

    # Head-batched PV matmul with bf16 operands, f32 accumulation.
    pv = lax.dot_general(p.astype(v.dtype), v, (((2,), (1,)), ((0,), (0,))),
                         preferred_element_type=jnp.float32)        # (H, tq, Dh)
    acc_ref[...] = alpha * acc_ref[...] + pv
    m_ref[...] = m_new

    @pl.when(j == pl.num_programs(2) - 1)
    def _finalize():
        inv_l = pl.reciprocal(l_ref[...], approx=True)              # EUP slot
        o_ref[0] = (acc_ref[...] * inv_l).astype(o_ref.dtype)


# ---------------------------------------------------------------------------
# Generation-aware tile / VMEM sizing
# ---------------------------------------------------------------------------
_TILE_LADDER = (1024, 512, 256, 128, 64, 32, 16, 8)


def _vmem_limit_bytes():
    cap = 128 * 1024 * 1024
    try:  # v5e/v6e: 128 MiB physical; v7x: 64 MiB per TensorCore
        info = pltpu.get_tpu_info()
        cap = int(getattr(info, "vmem_capacity_bytes", cap) or cap)
    except Exception:
        pass
    return min(cap // 2, 64 * 1024 * 1024)


def _pick_tiles(L, H, Dh, itemsize, vmem_limit, batch, q_tile=None, kv_tile=None):
    pad = lambda n, m: -(-n // m) * m
    candidates = [t for t in _TILE_LADDER if t <= L and L % t == 0] or [L]
    budget = int(0.7 * vmem_limit)

    def cost(tq, tk):
        blk = lambda t: 2 * H * pad(t, 8) * pad(Dh, 128) * itemsize   # double-buffered
        scratch = H * pad(tq, 8) * (2 * 128 + pad(Dh, 128)) * 4       # m, l, acc (f32)
        return 2 * blk(tq) + 2 * blk(tk) + scratch                    # q,o + k,v + scratch

    t = next((c for c in candidates if cost(c, c) <= budget), candidates[-1])
    tq = q_tile if q_tile is not None else t
    tk = kv_tile if kv_tile is not None else t
    # v7x megacore: keep >= 2 units of parallel work when batch is tiny.
    if q_tile is None and batch * (L // tq) < 2:
        smaller = [c for c in candidates if c < tq and batch * (L // c) >= 2]
        if smaller:
            tq = smaller[0]
    for name, tt in (("q_tile", tq), ("kv_tile", tk)):
        if L % tt != 0:
            raise ValueError(f"{name}={tt} must divide padded length {L}")
    return tq, tk


# ---------------------------------------------------------------------------
# Wrapper: layout + normalization hoisting + pallas_call
# ---------------------------------------------------------------------------
def shared_qk_attention(qk, v, *, n_heads, causal=False, q_tile=None, kv_tile=None):
    """qk, v: (B, L, H*Dh). Returns attention output in head-major (B, H, L, Dh) bf16."""
    B, L, HD = qk.shape
    assert HD % n_heads == 0
    Dh = HD // n_heads
    scale = Dh ** -0.5

    # Head-major layout so the kernel gets (H, t, Dh) blocks for batched matmuls.
    qh = qk.reshape(B, L, n_heads, Dh).transpose(0, 2, 1, 3).astype(jnp.float32)
    vh = v.reshape(B, L, n_heads, Dh).transpose(0, 2, 1, 3)

    # Hoisted out of the kernel: key l2-normalization (Reformer shared-QK) and the
    # softmax scale folded into q (valid only because keys are l2-normalized).
    kh = qh * lax.rsqrt(jnp.maximum(jnp.sum(qh * qh, axis=-1, keepdims=True), 1e-12))
    qh = qh * scale

    # bf16 MXU operands; the kernel accumulates in f32.
    qh = qh.astype(jnp.bfloat16)
    kh = kh.astype(jnp.bfloat16)
    vh = vh.astype(jnp.bfloat16)

    vmem_limit = _vmem_limit_bytes()
    tq, tk = _pick_tiles(L, n_heads, Dh, qh.dtype.itemsize, vmem_limit, B,
                         q_tile=q_tile, kv_tile=kv_tile)

    kernel = partial(_shared_qk_attn_kernel, causal=causal)

    return pl.pallas_call(
        kernel,
        out_shape=jax.ShapeDtypeStruct((B, n_heads, L, Dh), jnp.bfloat16),
        grid_spec=pltpu.PrefetchScalarGridSpec(
            num_scalar_prefetch=0,
            grid=(B, L // tq, L // tk),
            in_specs=[
                pl.BlockSpec((1, n_heads, tq, Dh), lambda b, i, j: (b, 0, i, 0)),  # q
                pl.BlockSpec((1, n_heads, tk, Dh), lambda b, i, j: (b, 0, j, 0)),  # k
                pl.BlockSpec((1, n_heads, tk, Dh), lambda b, i, j: (b, 0, j, 0)),  # v
            ],
            out_specs=pl.BlockSpec((1, n_heads, tq, Dh), lambda b, i, j: (b, 0, i, 0)),
            scratch_shapes=[
                pltpu.VMEM((n_heads, tq, 1), jnp.float32),    # running max
                pltpu.VMEM((n_heads, tq, 1), jnp.float32),    # running sum
                pltpu.VMEM((n_heads, tq, Dh), jnp.float32),   # output accumulator
            ],
        ),
        compiler_params=pltpu.CompilerParams(
            dimension_semantics=("parallel", "parallel", "arbitrary"),
            vmem_limit_bytes=vmem_limit,
        ),
    )(qh, kh, vh)


# ---------------------------------------------------------------------------
# ReformerLayer forward (glue: projections + fit_length padding + slice back)
# ---------------------------------------------------------------------------
def init_reformer_layer_params(key, d_model, n_heads):
    dim_head = d_model // n_heads
    hd = dim_head * n_heads
    k1, k2, k3, k4 = jax.random.split(key, 4)
    return {
        "w_qk": jax.random.normal(k1, (d_model, hd), jnp.float32) / math.sqrt(d_model),
        "w_v": jax.random.normal(k2, (d_model, hd), jnp.float32) / math.sqrt(d_model),
        "w_out": jax.random.normal(k3, (hd, d_model), jnp.float32) / math.sqrt(hd),
        "b_out": 0.02 * jax.random.normal(k4, (d_model,), jnp.float32),
    }


def reformer_layer_forward(params, queries, keys=None, values=None, attn_mask=None,
                           tau=None, delta=None, *, n_heads, bucket_size=4,
                           causal=False, q_tile=None, kv_tile=None):
    """Mirrors ReformerLayer.forward: only `queries` is used; returns (out, None)."""
    del keys, values, attn_mask, tau, delta  # ignored by ReformerLayer.forward
    B, N, C = queries.shape
    mult = 2 * bucket_size
    pad = (-N) % mult
    x = jnp.pad(queries, ((0, 0), (0, pad), (0, 0))) if pad else queries  # fit_length

    qk = x @ params["w_qk"]          # toqk (no bias)  -> (B, Np, H*Dh)
    v = x @ params["w_v"]            # tov  (no bias)  -> (B, Np, H*Dh)
    attn = shared_qk_attention(qk, v, n_heads=n_heads, causal=causal,
                               q_tile=q_tile, kv_tile=kv_tile)  # (B, H, Np, Dh) bf16
    Dh = qk.shape[-1] // n_heads
    w_out = params["w_out"].reshape(n_heads, Dh, C)
    # to_out Linear (with bias); head merge fused into the projection einsum.
    out = jnp.einsum("bhld,hdc->blc", attn.astype(jnp.float32), w_out) + params["b_out"]
    return out[:, :N, :], None


# ---------------------------------------------------------------------------
# Pure-JAX reference (same dense shared-QK approximation, exact softmax; mirrors
# the kernel's bf16 operand casts so the comparison isolates the kernel itself)
# ---------------------------------------------------------------------------
def _reference_forward(params, queries, *, n_heads, bucket_size=4, causal=False):
    B, N, C = queries.shape
    mult = 2 * bucket_size
    pad = (-N) % mult
    x = jnp.pad(queries, ((0, 0), (0, pad), (0, 0))) if pad else queries
    Np = x.shape[1]
    qk = x @ params["w_qk"]
    v = x @ params["w_v"]
    Dh = qk.shape[-1] // n_heads
    qh = qk.reshape(B, Np, n_heads, Dh).transpose(0, 2, 1, 3).astype(jnp.float32)
    vh = v.reshape(B, Np, n_heads, Dh).transpose(0, 2, 1, 3).astype(jnp.float32)
    kh = qh * lax.rsqrt(jnp.maximum(jnp.sum(qh * qh, -1, keepdims=True), 1e-12))
    qh = qh * (Dh ** -0.5)
    qh = qh.astype(jnp.bfloat16).astype(jnp.float32)
    kh = kh.astype(jnp.bfloat16).astype(jnp.float32)
    vh = vh.astype(jnp.bfloat16).astype(jnp.float32)
    s = jnp.einsum("bhid,bhjd->bhij", qh, kh)
    idx = jnp.arange(Np)
    s = jnp.where((idx[:, None] == idx[None, :])[None, None], -5e4, s)
    if causal:
        s = jnp.where((idx[None, :] > idx[:, None])[None, None], -1e9, s)
    a = jax.nn.softmax(s, axis=-1)
    o = jnp.einsum("bhij,bhjd->bhid", a, vh)                       # (B, H, Np, Dh)
    w_out = params["w_out"].reshape(n_heads, Dh, C)
    out = jnp.einsum("bhld,hdc->blc", o, w_out) + params["b_out"]
    return out[:, :N, :]


if __name__ == "__main__":
    key = jax.random.PRNGKey(0)
    B, N, d_model, n_heads, bucket_size = 2, 30, 32, 4, 4   # N=30 exercises fit_length
    kp, kx = jax.random.split(key)
    params = init_reformer_layer_params(kp, d_model, n_heads)
    queries = jax.random.normal(kx, (B, N, d_model), dtype=jnp.float32)

    ref = _reference_forward(params, queries, n_heads=n_heads,
                             bucket_size=bucket_size, causal=False)

    # 1) small explicit tiles -> multiple q and kv grid steps (online softmax path)
    out, attn = reformer_layer_forward(params, queries, None, None, None, None, None,
                                       n_heads=n_heads, bucket_size=bucket_size,
                                       causal=False, q_tile=8, kv_tile=8)
    out = jax.block_until_ready(out)
    assert out.shape == (B, N, d_model)
    assert attn is None
    err1 = float(jnp.max(jnp.abs(out - ref)))
    assert jnp.allclose(out, ref, atol=2e-2, rtol=2e-2), f"mismatch (tiled), max_err={err1}"

    # 2) auto tile / VMEM sizing path (single kv step at this tiny size)
    out2, _ = reformer_layer_forward(params, queries, None, None, None, None, None,
                                     n_heads=n_heads, bucket_size=bucket_size,
                                     causal=False)
    out2 = jax.block_until_ready(out2)
    err2 = float(jnp.max(jnp.abs(out2 - ref)))
    assert jnp.allclose(out2, ref, atol=2e-2, rtol=2e-2), f"mismatch (auto), max_err={err2}"

    print("KERNEL_OK")
</pallas_src>

<mosaic_0001>
module attributes {stable_mosaic.version = 11 : i64} {
  func.func @_shared_qk_attn_kernel(%arg0: i32, %arg1: i32, %arg2: i32, %arg3: memref<1x4x8x8xbf16, #tpu.memory_space<vmem>>, %arg4: memref<1x4x8x8xbf16, #tpu.memory_space<vmem>>, %arg5: memref<1x4x8x8xbf16, #tpu.memory_space<vmem>>, %arg6: memref<1x4x8x8xbf16, #tpu.memory_space<vmem>>, %arg7: memref<4x8x1xf32, #tpu.memory_space<vmem>>, %arg8: memref<4x8x1xf32, #tpu.memory_space<vmem>>, %arg9: memref<4x8x8xf32, #tpu.memory_space<vmem>>) attributes {dimension_semantics = [#tpu.dimension_semantics<parallel>, #tpu.dimension_semantics<parallel>, #tpu.dimension_semantics<arbitrary>], iteration_bounds = array<i64: 2, 4, 4>, scalar_prefetch = 0 : i64, scratch_operands = 3 : i64, tpu.core_type = #tpu.core_type<tc>, window_params = [{transform_indices = @transform_0, window_bounds = array<i64: 1, 4, 8, 8>}, {transform_indices = @transform_1, window_bounds = array<i64: 1, 4, 8, 8>}, {transform_indices = @transform_2, window_bounds = array<i64: 1, 4, 8, 8>}, {transform_indices = @transform_3, window_bounds = array<i64: 1, 4, 8, 8>}]} {
    %c0_i32 = arith.constant 0 : i32
    %0 = arith.cmpi eq, %arg2, %c0_i32 : i32
    %1 = arith.extui %0 : i1 to i32
    %c0_i32_0 = arith.constant 0 : i32
    %2 = arith.cmpi ne, %1, %c0_i32_0 : i32
    scf.if %2 {
      %cst_36 = arith.constant 0xFF800000 : f32
      %50 = vector.broadcast %cst_36 : f32 to vector<4x8x1xf32>
      %c0_37 = arith.constant 0 : index
      %c0_38 = arith.constant 0 : index
      %c0_39 = arith.constant 0 : index
      %51 = vector.load %arg7[%c0_37, %c0_38, %c0_39] : memref<4x8x1xf32, #tpu.memory_space<vmem>>, vector<4x8x1xf32>
      tpu.vector_store %arg7[%c0_37, %c0_38, %c0_39], %50 {strides = array<i32>} : memref<4x8x1xf32, #tpu.memory_space<vmem>>, vector<4x8x1xf32>,
      %cst_40 = arith.constant 0.000000e+00 : f32
      %52 = vector.broadcast %cst_40 : f32 to vector<4x8x1xf32>
      %c0_41 = arith.constant 0 : index
      %c0_42 = arith.constant 0 : index
      %c0_43 = arith.constant 0 : index
      %53 = vector.load %arg8[%c0_41, %c0_42, %c0_43] : memref<4x8x1xf32, #tpu.memory_space<vmem>>, vector<4x8x1xf32>
      tpu.vector_store %arg8[%c0_41, %c0_42, %c0_43], %52 {strides = array<i32>} : memref<4x8x1xf32, #tpu.memory_space<vmem>>, vector<4x8x1xf32>,
      %cst_44 = arith.constant 0.000000e+00 : f32
      %54 = vector.broadcast %cst_44 : f32 to vector<4x8x8xf32>
      %c0_45 = arith.constant 0 : index
      %c0_46 = arith.constant 0 : index
      %c0_47 = arith.constant 0 : index
      %55 = vector.load %arg9[%c0_45, %c0_46, %c0_47] : memref<4x8x8xf32, #tpu.memory_space<vmem>>, vector<4x8x8xf32>
      tpu.vector_store %arg9[%c0_45, %c0_46, %c0_47], %54 {strides = array<i32>} : memref<4x8x8xf32, #tpu.memory_space<vmem>>, vector<4x8x8xf32>,
    } else {
    }
    %c0 = arith.constant 0 : index
    %c0_1 = arith.constant 0 : index
    %c0_2 = arith.constant 0 : index
    %c0_3 = arith.constant 0 : index
    %3 = vector.load %arg3[%c0, %c0_1, %c0_2, %c0_3] : memref<1x4x8x8xbf16, #tpu.memory_space<vmem>>, vector<1x4x8x8xbf16>
    %4 = vector.shape_cast %3 : vector<1x4x8x8xbf16> to vector<4x8x8xbf16>
    %c0_4 = arith.constant 0 : index
    %c0_5 = arith.constant 0 : index
    %c0_6 = arith.constant 0 : index
    %c0_7 = arith.constant 0 : index
    %5 = vector.load %arg4[%c0_4, %c0_5, %c0_6, %c0_7] : memref<1x4x8x8xbf16, #tpu.memory_space<vmem>>, vector<1x4x8x8xbf16>
    %6 = vector.shape_cast %5 : vector<1x4x8x8xbf16> to vector<4x8x8xbf16>
    %c0_8 = arith.constant 0 : index
    %c0_9 = arith.constant 0 : index
    %c0_10 = arith.constant 0 : index
    %c0_11 = arith.constant 0 : index
    %7 = vector.load %arg5[%c0_8, %c0_9, %c0_10, %c0_11] : memref<1x4x8x8xbf16, #tpu.memory_space<vmem>>, vector<1x4x8x8xbf16>
    %8 = vector.shape_cast %7 : vector<1x4x8x8xbf16> to vector<4x8x8xbf16>
    %cst = arith.constant dense<0.000000e+00> : vector<4x8x8xf32>
    %9 = tpu.matmul %4, %6, %cst {dimension_numbers = #tpu.dot_dimension_numbers<[2], [2], [1], [1], [0, 0, 0, 1, 1, 1], [0], [0]>} : vector<4x8x8xbf16>, vector<4x8x8xbf16>, vector<4x8x8xf32> -> vector<4x8x8xf32>
    %c8_i32 = arith.constant 8 : i32
    %10 = arith.muli %arg1, %c8_i32 : i32
    %11 = tpu.iota {dimensions = array<i32: 0>} : vector<8x8xi32>
    %12 = vector.broadcast %10 : i32 to vector<8x8xi32>
    %13 = arith.addi %12, %11 : vector<8x8xi32>
    %c8_i32_12 = arith.constant 8 : i32
    %14 = arith.muli %arg2, %c8_i32_12 : i32
    %15 = tpu.iota {dimensions = array<i32: 1>} : vector<8x8xi32>
    %16 = vector.broadcast %14 : i32 to vector<8x8xi32>
    %17 = arith.addi %16, %15 : vector<8x8xi32>
    %18 = arith.cmpi eq, %13, %17 : vector<8x8xi32>
    %19 = vector.shape_cast %18 : vector<8x8xi1> to vector<1x8x8xi1>
    %cst_13 = arith.constant -5.000000e+04 : f32
    %20 = vector.shape_cast %19 : vector<1x8x8xi1> to vector<1x8x8xi1>
    %21 = vector.broadcast %20 : vector<1x8x8xi1> to vector<4x8x8xi1>
    %22 = vector.broadcast %cst_13 : f32 to vector<4x8x8xf32>
    %23 = arith.select %21, %22, %9 : vector<4x8x8xi1>, vector<4x8x8xf32>
    %c0_14 = arith.constant 0 : index
    %c0_15 = arith.constant 0 : index
    %c0_16 = arith.constant 0 : index
    %24 = vector.load %arg7[%c0_14, %c0_15, %c0_16] : memref<4x8x1xf32, #tpu.memory_space<vmem>>, vector<4x8x1xf32>
    %cst_17 = arith.constant dense<0xFF800000> : vector<4x8xf32>
    %25 = vector.multi_reduction <maximumf>, %23, %cst_17 [2] : vector<4x8x8xf32> to vector<4x8xf32>
    %26 = vector.shape_cast %25 : vector<4x8xf32> to vector<4x8x1xf32>
    %27 = arith.maximumf %24, %26 : vector<4x8x1xf32>
    %28 = arith.subf %24, %27 : vector<4x8x1xf32>
    %29 = math.exp %28 : vector<4x8x1xf32>
    %30 = vector.broadcast %27 : vector<4x8x1xf32> to vector<4x8x8xf32>
    %31 = arith.subf %23, %30 : vector<4x8x8xf32>
    %32 = math.exp %31 : vector<4x8x8xf32>
    %c0_18 = arith.constant 0 : index
    %c0_19 = arith.constant 0 : index
    %c0_20 = arith.constant 0 : index
    %33 = vector.load %arg8[%c0_18, %c0_19, %c0_20] : memref<4x8x1xf32, #tpu.memory_space<vmem>>, vector<4x8x1xf32>
    %34 = arith.mulf %29, %33 : vector<4x8x1xf32>
    %cst_21 = arith.constant dense<0.000000e+00> : vector<4x8xf32>
    %35 = vector.multi_reduction <add>, %32, %cst_21 [2] : vector<4x8x8xf32> to vector<4x8xf32>
    %36 = vector.shape_cast %35 : vector<4x8xf32> to vector<4x8x1xf32>
    %37 = arith.addf %34, %36 : vector<4x8x1xf32>
    %c0_22 = arith.constant 0 : index
    %c0_23 = arith.constant 0 : index
    %c0_24 = arith.constant 0 : index
    %38 = vector.load %arg8[%c0_22, %c0_23, %c0_24] : memref<4x8x1xf32, #tpu.memory_space<vmem>>, vector<4x8x1xf32>
    tpu.vector_store %arg8[%c0_22, %c0_23, %c0_24], %37 {strides = array<i32>} : memref<4x8x1xf32, #tpu.memory_space<vmem>>, vector<4x8x1xf32>,
    %39 = arith.truncf %32 : vector<4x8x8xf32> to vector<4x8x8xbf16>
    %cst_25 = arith.constant dense<0.000000e+00> : vector<4x8x8xf32>
    %40 = tpu.matmul %39, %8, %cst_25 {dimension_numbers = #tpu.dot_dimension_numbers<[2], [1], [1], [2], [0, 0, 0, 1, 1, 2], [0], [0]>} : vector<4x8x8xbf16>, vector<4x8x8xbf16>, vector<4x8x8xf32> -> vector<4x8x8xf32>
    %c0_26 = arith.constant 0 : index
    %c0_27 = arith.constant 0 : index
    %c0_28 = arith.constant 0 : index
    %41 = vector.load %arg9[%c0_26, %c0_27, %c0_28] : memref<4x8x8xf32, #tpu.memory_space<vmem>>, vector<4x8x8xf32>
    %42 = vector.broadcast %29 : vector<4x8x1xf32> to vector<4x8x8xf32>
    %43 = arith.mulf %42, %41 : vector<4x8x8xf32>
    %44 = arith.addf %43, %40 : vector<4x8x8xf32>
    %c0_29 = arith.constant 0 : index
    %c0_30 = arith.constant 0 : index
    %c0_31 = arith.constant 0 : index
    %45 = vector.load %arg9[%c0_29, %c0_30, %c0_31] : memref<4x8x8xf32, #tpu.memory_space<vmem>>, vector<4x8x8xf32>
    tpu.vector_store %arg9[%c0_29, %c0_30, %c0_31], %44 {strides = array<i32>} : memref<4x8x8xf32, #tpu.memory_space<vmem>>, vector<4x8x8xf32>,
    %c0_32 = arith.constant 0 : index
    %c0_33 = arith.constant 0 : index
    %c0_34 = arith.constant 0 : index
    %46 = vector.load %arg7[%c0_32, %c0_33, %c0_34] : memref<4x8x1xf32, #tpu.memory_space<vmem>>, vector<4x8x1xf32>
    tpu.vector_store %arg7[%c0_32, %c0_33, %c0_34], %27 {strides = array<i32>} : memref<4x8x1xf32, #tpu.memory_space<vmem>>, vector<4x8x1xf32>,
    %c3_i32 = arith.constant 3 : i32
    %47 = arith.cmpi eq, %arg2, %c3_i32 : i32
    %48 = arith.extui %47 : i1 to i32
    %c0_i32_35 = arith.constant 0 : i32
    %49 = arith.cmpi ne, %48, %c0_i32_35 : i32
    scf.if %49 {
      %c0_36 = arith.constant 0 : index
      %c0_37 = arith.constant 0 : index
      %c0_38 = arith.constant 0 : index
      %50 = vector.load %arg8[%c0_36, %c0_37, %c0_38] : memref<4x8x1xf32, #tpu.memory_space<vmem>>, vector<4x8x1xf32>
      %51 = tpu.reciprocal %50 {approx = true} : vector<4x8x1xf32> -> vector<4x8x1xf32>
      %c0_39 = arith.constant 0 : index
      %c0_40 = arith.constant 0 : index
      %c0_41 = arith.constant 0 : index
      %52 = vector.load %arg9[%c0_39, %c0_40, %c0_41] : memref<4x8x8xf32, #tpu.memory_space<vmem>>, vector<4x8x8xf32>
      %53 = vector.broadcast %51 : vector<4x8x1xf32> to vector<4x8x8xf32>
      %54 = arith.mulf %52, %53 : vector<4x8x8xf32>
      %55 = arith.truncf %54 : vector<4x8x8xf32> to vector<4x8x8xbf16>
      %c0_42 = arith.constant 0 : index
      %c0_43 = arith.constant 0 : index
      %c0_44 = arith.constant 0 : index
      %c0_45 = arith.constant 0 : index
      %56 = vector.load %arg6[%c0_42, %c0_43, %c0_44, %c0_45] : memref<1x4x8x8xbf16, #tpu.memory_space<vmem>>, vector<1x4x8x8xbf16>
      %57 = vector.shape_cast %56 : vector<1x4x8x8xbf16> to vector<4x8x8xbf16>
      %58 = vector.shape_cast %55 : vector<4x8x8xbf16> to vector<1x4x8x8xbf16>
      tpu.vector_store %arg6[%c0_42, %c0_43, %c0_44, %c0_45], %58 {strides = array<i32>} : memref<1x4x8x8xbf16, #tpu.memory_space<vmem>>, vector<1x4x8x8xbf16>,
    } else {
    }
    return
  }
  func.func @transform_0(%arg0: i32, %arg1: i32, %arg2: i32) -> (i32, i32, i32, i32) {
    %c0_i32 = arith.constant 0 : i32
    %c0_i32_0 = arith.constant 0 : i32
    %c0_i32_1 = arith.constant 0 : i32
    return %arg0, %c0_i32, %arg1, %c0_i32_0 : i32, i32, i32, i32
  }
  func.func @transform_1(%arg0: i32, %arg1: i32, %arg2: i32) -> (i32, i32, i32, i32) {
    %c0_i32 = arith.constant 0 : i32
    %c0_i32_0 = arith.constant 0 : i32
    %c0_i32_1 = arith.constant 0 : i32
    return %arg0, %c0_i32, %arg2, %c0_i32_0 : i32, i32, i32, i32
  }
  func.func @transform_2(%arg0: i32, %arg1: i32, %arg2: i32) -> (i32, i32, i32, i32) {
    %c0_i32 = arith.constant 0 : i32
    %c0_i32_0 = arith.constant 0 : i32
    %c0_i32_1 = arith.constant 0 : i32
    return %arg0, %c0_i32, %arg2, %c0_i32_0 : i32, i32, i32, i32
  }
  func.func @transform_3(%arg0: i32, %arg1: i32, %arg2: i32) -> (i32, i32, i32, i32) {
    %c0_i32 = arith.constant 0 : i32
    %c0_i32_0 = arith.constant 0 : i32
    %c0_i32_1 = arith.constant 0 : i32
    return %arg0, %c0_i32, %arg1, %c0_i32_0 : i32, i32, i32, i32
  }
}

</mosaic_0001>

<llo_original>
// kernel: tpu_custom_call.1
$region0: #{tpu_custom_call.1}
  #allocation0 [shape = 'u32[]', space=smem, size = 0x4, offset = 0x4, fixed_abs, tag = 'smem constant byte address 0x4 - core index']
  #allocation1 [shape = 'u32[144,128]{1,0:T(1,128)}', space=vmem, size = 0x12000, scoped, tag = 'internal scratch']
  #allocation2 [shape = 'f32[4,8,1]{2,1,0:T(8,128)}', space=vmem, size = 0x4000, scoped, tag = 'scratch operand']
  #allocation3 [shape = 'f32[4,8,1]{2,1,0:T(8,128)}', space=vmem, size = 0x4000, scoped, tag = 'scratch operand']
  #allocation4 [shape = 'f32[4,8,8]{2,1,0:T(8,128)}', space=vmem, size = 0x4000, scoped, tag = 'scratch operand']
  %s0 = inlined_call_operand.vmem [shape: bf16[2,4,32,8], index: 0, kind: input, shape index: {}]
  %s1 = inlined_call_operand.vmem [shape: bf16[2,4,32,8], index: 1, kind: input, shape index: {}]
  %s2 = inlined_call_operand.vmem [shape: bf16[2,4,32,8], index: 2, kind: input, shape index: {}]
  %s3 = inlined_call_operand.vmem [shape: bf16[2,4,32,8], index: 3, kind: output, shape index: {}]
  %s4 = sld [smem:[#allocation0]]
  $region213: #{tpu_custom_call.1} parent=0
    _
  %s6 = ssub.s32 1, %s4
  %s7 = scalar_select 0, %s6, %s4
  $region1: #{tpu_custom_call.1} parent=0
    #allocation5 [shape = 'u8[16384]{0}', space=vmem, size = 0x4000, scoped, tag = 'input window, operand 0']
    #allocation6 [shape = 'u8[16384]{0}', space=vmem, size = 0x4000, scoped, tag = 'input window, operand 1']
    #allocation7 [shape = 'u8[16384]{0}', space=vmem, size = 0x4000, scoped, tag = 'input window, operand 2']
    #allocation8 [shape = 'u8[16384]{0}', space=vmem, size = 0x4000, scoped, tag = 'output window, operand 0']
    loop: start=0, step=1, limit=34
    $region2: #{tpu_custom_call.1} parent=1 // loop_pre_header
      _
    $region3: #{tpu_custom_call.1} parent=1 // loop_header
      %s9 = sphi 0, %s13
      %p10 = scmp.ge.s32.totalorder %s9, 34
      %s16 = sphi 0, %s35
      %s17 = sphi 0, %s31
      %s18 = sphi 0, %s27
      %s19 = sphi 0, %s16
      %s20 = sphi 0, %s17
      %s21 = sphi 0, %s18
      %s22 = sphi 0, %s19
      %s23 = sphi 0, %s20
      %s24 = sphi 0, %s21
      %s40 = sphi 0, %s42
      %s43 = sphi 0, %s40
      %s44 = sphi 0, %s43
      %s60 = sphi 0, %s44
      %s68 = sphi 0, %s70
      %s71 = sphi 0, %s68
      %s72 = sphi 0, %s71
      %s88 = sphi 0, %s72
      %s96 = sphi 0, %s98
      %s99 = sphi 0, %s96
      %s100 = sphi 0, %s99
      %s116 = sphi 0, %s100
      %s124 = sphi 0, %s126
      %s127 = sphi 0, %s124
      %s128 = sphi 0, %s127
      %s144 = sphi 0, %s128
    $region4: #{tpu_custom_call.1} parent=1 // loop_header_branch
      %12 = sbr.rel (%p10) target = $region8
    $region5: #{tpu_custom_call.1} parent=1 // loop_body
      %s14 = ssub.s32 %s9, 1
      %s15 = ssub.s32 %s9, 2
      %s25 = sadd.s32 1, %s18
      %p26 = scmp.ge.s32.totalorder %s25, 4
      %s27 = scalar_select %p26, 0, %s25
      %s28 = sadd.s32 1, %s17
      %s29 = scalar_select %p26, %s28, %s17
      %p30 = scmp.ge.s32.totalorder %s29, 4
      %s31 = scalar_select %p30, 0, %s29
      %s32 = sadd.s32 1, %s16
      %s33 = scalar_select %p30, %s32, %s16
      %p34 = scmp.ge.s32.totalorder %s33, 2
      %s35 = scalar_select %p34, 0, %s33
      %s36 = ssub.s32 %s16, %s35
      %s37 = ssub.s32 %s17, %s31
      %s38 = sor.u32 %s36, %s37
      %p39 = scmp.eq.s32.totalorder %s38, 0
      %s41 = sadd.s32 %s40, 1
      %s42 = scalar_select %p39, %s40, %s41
      %p45 = pneg %p39
      %p46 = scmp.eq.s32.totalorder %s9, 31
      %p47 = por %p45, %p46
      %p48 = scmp.ne.s32.totalorder %s40, %s43
      %p49 = scmp.eq.s32.totalorder %s9, 0
      %p50 = por %p48, %p49
      %p51 = scmp.ne.s32.totalorder %s40, %s43
      %p52 = scmp.eq.s32.totalorder %s14, 31
      %p53 = por %p51, %p52
      %p54 = scmp.ne.s32.totalorder %s43, %s44
      %p55 = scmp.eq.s32.totalorder %s14, 0
      %p56 = por %p54, %p55
      %p57 = scmp.ne.s32.totalorder %s43, %s44
      %p58 = scmp.eq.s32.totalorder %s15, 31
      %p59 = por %p57, %p58
      %p61 = scmp.ne.s32.totalorder %s44, %s60
      %p62 = scmp.eq.s32.totalorder %s15, 0
      %p63 = por %p61, %p62
      %s64 = ssub.s32 %s16, %s35
      %s65 = ssub.s32 %s18, %s27
      %s66 = sor.u32 %s64, %s65
      %p67 = scmp.eq.s32.totalorder %s66, 0
      %s69 = sadd.s32 %s68, 1
      %s70 = scalar_select %p67, %s68, %s69
      %p73 = pneg %p67
      %p74 = scmp.eq.s32.totalorder %s9, 31
      %p75 = por %p73, %p74
      %p76 = scmp.ne.s32.totalorder %s68, %s71
      %p77 = scmp.eq.s32.totalorder %s9, 0
      %p78 = por %p76, %p77
      %p79 = scmp.ne.s32.totalorder %s68, %s71
      %p80 = scmp.eq.s32.totalorder %s14, 31
      %p81 = por %p79, %p80
      %p82 = scmp.ne.s32.totalorder %s71, %s72
      %p83 = scmp.eq.s32.totalorder %s14, 0
      %p84 = por %p82, %p83
      %p85 = scmp.ne.s32.totalorder %s71, %s72
      %p86 = scmp.eq.s32.totalorder %s15, 31
      %p87 = por %p85, %p86
      %p89 = scmp.ne.s32.totalorder %s72, %s88
      %p90 = scmp.eq.s32.totalorder %s15, 0
      %p91 = por %p89, %p90
      %s92 = ssub.s32 %s16, %s35
      %s93 = ssub.s32 %s18, %s27
      %s94 = sor.u32 %s92, %s93
      %p95 = scmp.eq.s32.totalorder %s94, 0
      %s97 = sadd.s32 %s96, 1
      %s98 = scalar_select %p95, %s96, %s97
      %p101 = pneg %p95
      %p102 = scmp.eq.s32.totalorder %s9, 31
      %p103 = por %p101, %p102
      %p104 = scmp.ne.s32.totalorder %s96, %s99
      %p105 = scmp.eq.s32.totalorder %s9, 0
      %p106 = por %p104, %p105
      %p107 = scmp.ne.s32.totalorder %s96, %s99
      %p108 = scmp.eq.s32.totalorder %s14, 31
      %p109 = por %p107, %p108
      %p110 = scmp.ne.s32.totalorder %s99, %s100
      %p111 = scmp.eq.s32.totalorder %s14, 0
      %p112 = por %p110, %p111
      %p113 = scmp.ne.s32.totalorder %s99, %s100
      %p114 = scmp.eq.s32.totalorder %s15, 31
      %p115 = por %p113, %p114
      %p117 = scmp.ne.s32.totalorder %s100, %s116
      %p118 = scmp.eq.s32.totalorder %s15, 0
      %p119 = por %p117, %p118
      %s120 = ssub.s32 %s16, %s35
      %s121 = ssub.s32 %s17, %s31
      %s122 = sor.u32 %s120, %s121
      %p123 = scmp.eq.s32.totalorder %s122, 0
      %s125 = sadd.s32 %s124, 1
      %s126 = scalar_select %p123, %s124, %s125
      %p129 = pneg %p123
      %p130 = scmp.eq.s32.totalorder %s9, 31
      %p131 = por %p129, %p130
      %p132 = scmp.ne.s32.totalorder %s124, %s127
      %p133 = scmp.eq.s32.totalorder %s9, 0
      %p134 = por %p132, %p133
      %p135 = scmp.ne.s32.totalorder %s124, %s127
      %p136 = scmp.eq.s32.totalorder %s14, 31
      %p137 = por %p135, %p136
      %p138 = scmp.ne.s32.totalorder %s127, %s128
      %p139 = scmp.eq.s32.totalorder %s14, 0
      %p140 = por %p138, %p139
      %p141 = scmp.ne.s32.totalorder %s127, %s128
      %p142 = scmp.eq.s32.totalorder %s15, 31
      %p143 = por %p141, %p142
      %p145 = scmp.ne.s32.totalorder %s128, %s144
      %p146 = scmp.eq.s32.totalorder %s15, 0
      %p147 = por %p145, %p146
      %p148 = scmp.le.s32.totalorder 1, %s9
      %p149 = scmp.lt.s32.totalorder %s9, 33
      %p150 = pnand %p148, %p149
      %p151 = pneg %p150
      // Predicated region
      $region9: #{tpu_custom_call.1} parent=5 // pred_check
        _
      $region10: #{tpu_custom_call.1} parent=5 // pred_check_branch
        %153 = sbr.rel (%p150) target = $region12
      $region11: #{tpu_custom_call.1} parent=5 // pred_region
        %s154 = ssub.s32 %s9, 1
      $region12: #{tpu_custom_call.1} parent=5 // pred_fallthru
        _
      %p155 = scmp.lt.s32.totalorder %s9, 32
      // Predicated region
      $region13: #{tpu_custom_call.1} parent=5 // pred_check
        %p156 = pneg %p155
      $region14: #{tpu_custom_call.1} parent=5 // pred_check_branch
        %158 = sbr.rel (%p156) target = $region16
      $region15: #{tpu_custom_call.1} parent=5 // pred_region
        // Predicated region
        $region17: #{tpu_custom_call.1} parent=15 // pred_check
          %p159 = pneg %p50
        $region18: #{tpu_custom_call.1} parent=15 // pred_check_branch
          %161 = sbr.rel (%p159) target = $region20
        $region19: #{tpu_custom_call.1} parent=15 // pred_region
          %s162 = sand.u32 %s40, 1
          %s163 = sand.u32 %s40, 1
          %s164 = smul.addr %s163, 16
          %s165 = scalar_lea.vmem [#allocation5], %s164
          %s166 = smul.addr %s16, 16
          %s167 = sadd.s32 %s17, %s166
          %s168 = smul.addr %s167, 4
          %s169 = scalar_lea.vmem %s0, %s168
          // Predicated region
          $region21: #{tpu_custom_call.1} parent=19 // pred_check
            _
          $region22: #{tpu_custom_call.1} parent=19 // pred_check_branch
            %171 = sbr.rel (0) target = $region24
          $region23: #{tpu_custom_call.1} parent=19 // pred_region
            // Predicated region
            $region25: #{tpu_custom_call.1} parent=23 // pred_check
              _
            $region26: #{tpu_custom_call.1} parent=23 // pred_check_branch
              %173 = sbr.rel target = $region28
            $region27: #{tpu_custom_call.1} parent=23 // pred_region
              // Predicated region
              $region40: #{tpu_custom_call.1} parent=27 // pred_check
                _
              $region41: #{tpu_custom_call.1} parent=27 // pred_check_branch
                %195 = sbr.rel (0) target = $region43
              $region42: #{tpu_custom_call.1} parent=27 // pred_region
                loop: start=0, step=1, limit=1
                $region44: #{tpu_custom_call.1} parent=42 // loop_pre_header
                  _
                $region45: #{tpu_custom_call.1} parent=42 // loop_header
                  %s197 = sphi 0, %s201
                  %p198 = scmp.ge.s32.totalorder %s197, 1
                  %s202 = sphi %s169, %s169
                  %s203 = sphi %s165, %s165
                $region46: #{tpu_custom_call.1} parent=42 // loop_header_branch
                  %200 = sbr.rel (%p198) target = $region50
                $region47: #{tpu_custom_call.1} parent=42 // loop_body
                  _
                $region48: #{tpu_custom_call.1} parent=42 // loop_footer
                  %s201 = sadd.s32 1, %s197
                $region49: #{tpu_custom_call.1} parent=42 // loop_footer_branch
                  %196 = sbr.rel target = $region45
                $region50: #{tpu_custom_call.1} parent=42 // loop_exit
                  _
                %s205 = ssub.s32 16, 1
                loop: start=0, step=1, limit=1
                $region51: #{tpu_custom_call.1} parent=42 // loop_pre_header
                  _
                $region52: #{tpu_custom_call.1} parent=42 // loop_header
                  %s207 = sphi 0, %s211
                  %p208 = scmp.ge.s32.totalorder %s207, 1
                  %s212 = sphi %s169, %s169
                  %s213 = sphi %s165, %s165
                $region53: #{tpu_custom_call.1} parent=42 // loop_header_branch
                  %210 = sbr.rel (%p208) target = $region57
                $region54: #{tpu_custom_call.1} parent=42 // loop_body
                  %v214 = vld [vmem:[%s212] sm:%s205]
                  %215 = vst [vmem:[%s213] sm:%s205] %v214
                  %v216 = vld [vmem:[%s212 + $0x10] sm:%s205]
                  %217 = vst [vmem:[%s213 + $0x4] sm:%s205] %v216
                  %v218 = vld [vmem:[%s212 + $0x20] sm:%s205]
                  %219 = vst [vmem:[%s213 + $0x8] sm:%s205] %v218
                  %v220 = vld [vmem:[%s212 + $0x30] sm:%s205]
                  %221 = vst [vmem:[%s213 + $0xc] sm:%s205] %v220
                $region55: #{tpu_custom_call.1} parent=42 // loop_footer
                  %s211 = sadd.s32 1, %s207
                $region56: #{tpu_custom_call.1} parent=42 // loop_footer_branch
                  %206 = sbr.rel target = $region52
                $region57: #{tpu_custom_call.1} parent=42 // loop_exit
                  _
              $region43: #{tpu_custom_call.1} parent=27 // pred_fallthru
                _
            $region28: #{tpu_custom_call.1} parent=23 // pred_fallthru
              _
            // Predicated region
            $region29: #{tpu_custom_call.1} parent=23 // pred_check
              _
            $region30: #{tpu_custom_call.1} parent=23 // pred_check_branch
              %175 = sbr.rel (0) target = $region32
            $region31: #{tpu_custom_call.1} parent=23 // pred_region
              %s177 = ssub.s32 16, 1
              loop: start=0, step=1, limit=1
              $region33: #{tpu_custom_call.1} parent=31 // loop_pre_header
                _
              $region34: #{tpu_custom_call.1} parent=31 // loop_header
                %s179 = sphi 0, %s183
                %p180 = scmp.ge.s32.totalorder %s179, 1
                %s184 = sphi %s169, %s169
                %s185 = sphi %s165, %s165
              $region35: #{tpu_custom_call.1} parent=31 // loop_header_branch
                %182 = sbr.rel (%p180) target = $region39
              $region36: #{tpu_custom_call.1} parent=31 // loop_body
                %v186 = vld [vmem:[%s184] sm:%s177]
                %187 = vst [vmem:[%s185] sm:%s177] %v186
                %v188 = vld [vmem:[%s184 + $0x10] sm:%s177]
                %189 = vst [vmem:[%s185 + $0x4] sm:%s177] %v188
                %v190 = vld [vmem:[%s184 + $0x20] sm:%s177]
                %191 = vst [vmem:[%s185 + $0x8] sm:%s177] %v190
                %v192 = vld [vmem:[%s184 + $0x30] sm:%s177]
                %193 = vst [vmem:[%s185 + $0xc] sm:%s177] %v192
              $region37: #{tpu_custom_call.1} parent=31 // loop_footer
                %s183 = sadd.s32 1, %s179
              $region38: #{tpu_custom_call.1} parent=31 // loop_footer_branch
                %178 = sbr.rel target = $region34
              $region39: #{tpu_custom_call.1} parent=31 // loop_exit
                _
            $region32: #{tpu_custom_call.1} parent=23 // pred_fallthru
              _
          $region24: #{tpu_custom_call.1} parent=19 // pred_fallthru
            _
          %222 = vnop
        $region20: #{tpu_custom_call.1} parent=15 // pred_fallthru
          _
        // Predicated region
        $region58: #{tpu_custom_call.1} parent=15 // pred_check
          %p223 = pneg %p78
        $region59: #{tpu_custom_call.1} parent=15 // pred_check_branch
          %225 = sbr.rel (%p223) target = $region61
        $region60: #{tpu_custom_call.1} parent=15 // pred_region
          %s226 = sand.u32 %s68, 1
          %s227 = sand.u32 %s68, 1
          %s228 = smul.addr %s227, 16
          %s229 = scalar_lea.vmem [#allocation6], %s228
          %s230 = smul.addr %s16, 16
          %s231 = sadd.s32 %s18, %s230
          %s232 = smul.addr %s231, 4
          %s233 = scalar_lea.vmem %s1, %s232
          // Predicated region
          $region62: #{tpu_custom_call.1} parent=60 // pred_check
            _
          $region63: #{tpu_custom_call.1} parent=60 // pred_check_branch
            %235 = sbr.rel (0) target = $region65
          $region64: #{tpu_custom_call.1} parent=60 // pred_region
            // Predicated region
            $region66: #{tpu_custom_call.1} parent=64 // pred_check
              _
            $region67: #{tpu_custom_call.1} parent=64 // pred_check_branch
              %237 = sbr.rel target = $region69
            $region68: #{tpu_custom_call.1} parent=64 // pred_region
              // Predicated region
              $region81: #{tpu_custom_call.1} parent=68 // pred_check
                _
              $region82: #{tpu_custom_call.1} parent=68 // pred_check_branch
                %259 = sbr.rel (0) target = $region84
              $region83: #{tpu_custom_call.1} parent=68 // pred_region
                loop: start=0, step=1, limit=1
                $region85: #{tpu_custom_call.1} parent=83 // loop_pre_header
                  _
                $region86: #{tpu_custom_call.1} parent=83 // loop_header
                  %s261 = sphi 0, %s265
                  %p262 = scmp.ge.s32.totalorder %s261, 1
                  %s266 = sphi %s233, %s233
                  %s267 = sphi %s229, %s229
                $region87: #{tpu_custom_call.1} parent=83 // loop_header_branch
                  %264 = sbr.rel (%p262) target = $region91
                $region88: #{tpu_custom_call.1} parent=83 // loop_body
                  _
                $region89: #{tpu_custom_call.1} parent=83 // loop_footer
                  %s265 = sadd.s32 1, %s261
                $region90: #{tpu_custom_call.1} parent=83 // loop_footer_branch
                  %260 = sbr.rel target = $region86
                $region91: #{tpu_custom_call.1} parent=83 // loop_exit
                  _
                %s269 = ssub.s32 16, 1
                loop: start=0, step=1, limit=1
                $region92: #{tpu_custom_call.1} parent=83 // loop_pre_header
                  _
                $region93: #{tpu_custom_call.1} parent=83 // loop_header
                  %s271 = sphi 0, %s275
                  %p272 = scmp.ge.s32.totalorder %s271, 1
                  %s276 = sphi %s233, %s233
                  %s277 = sphi %s229, %s229
                $region94: #{tpu_custom_call.1} parent=83 // loop_header_branch
                  %274 = sbr.rel (%p272) target = $region98
                $region95: #{tpu_custom_call.1} parent=83 // loop_body
                  %v278 = vld [vmem:[%s276] sm:%s269]
                  %279 = vst [vmem:[%s277] sm:%s269] %v278
                  %v280 = vld [vmem:[%s276 + $0x10] sm:%s269]
                  %281 = vst [vmem:[%s277 + $0x4] sm:%s269] %v280
                  %v282 = vld [vmem:[%s276 + $0x20] sm:%s269]
                  %283 = vst [vmem:[%s277 + $0x8] sm:%s269] %v282
                  %v284 = vld [vmem:[%s276 + $0x30] sm:%s269]
                  %285 = vst [vmem:[%s277 + $0xc] sm:%s269] %v284
                $region96: #{tpu_custom_call.1} parent=83 // loop_footer
                  %s275 = sadd.s32 1, %s271
                $region97: #{tpu_custom_call.1} parent=83 // loop_footer_branch
                  %270 = sbr.rel target = $region93
                $region98: #{tpu_custom_call.1} parent=83 // loop_exit
                  _
              $region84: #{tpu_custom_call.1} parent=68 // pred_fallthru
                _
            $region69: #{tpu_custom_call.1} parent=64 // pred_fallthru
              _
            // Predicated region
            $region70: #{tpu_custom_call.1} parent=64 // pred_check
              _
            $region71: #{tpu_custom_call.1} parent=64 // pred_check_branch
              %239 = sbr.rel (0) target = $region73
            $region72: #{tpu_custom_call.1} parent=64 // pred_region
              %s241 = ssub.s32 16, 1
              loop: start=0, step=1, limit=1
              $region74: #{tpu_custom_call.1} parent=72 // loop_pre_header
                _
              $region75: #{tpu_custom_call.1} parent=72 // loop_header
                %s243 = sphi 0, %s247
                %p244 = scmp.ge.s32.totalorder %s243, 1
                %s248 = sphi %s233, %s233
                %s249 = sphi %s229, %s229
              $region76: #{tpu_custom_call.1} parent=72 // loop_header_branch
                %246 = sbr.rel (%p244) target = $region80
              $region77: #{tpu_custom_call.1} parent=72 // loop_body
                %v250 = vld [vmem:[%s248] sm:%s241]
                %251 = vst [vmem:[%s249] sm:%s241] %v250
                %v252 = vld [vmem:[%s248 + $0x10] sm:%s241]
                %253 = vst [vmem:[%s249 + $0x4] sm:%s241] %v252
                %v254 = vld [vmem:[%s248 + $0x20] sm:%s241]
                %255 = vst [vmem:[%s249 + $0x8] sm:%s241] %v254
                %v256 = vld [vmem:[%s248 + $0x30] sm:%s241]
                %257 = vst [vmem:[%s249 + $0xc] sm:%s241] %v256
              $region78: #{tpu_custom_call.1} parent=72 // loop_footer
                %s247 = sadd.s32 1, %s243
              $region79: #{tpu_custom_call.1} parent=72 // loop_footer_branch
                %242 = sbr.rel target = $region75
              $region80: #{tpu_custom_call.1} parent=72 // loop_exit
                _
            $region73: #{tpu_custom_call.1} parent=64 // pred_fallthru
              _
          $region65: #{tpu_custom_call.1} parent=60 // pred_fallthru
            _
          %286 = vnop
        $region61: #{tpu_custom_call.1} parent=15 // pred_fallthru
          _
        // Predicated region
        $region99: #{tpu_custom_call.1} parent=15 // pred_check
          %p287 = pneg %p106
        $region100: #{tpu_custom_call.1} parent=15 // pred_check_branch
          %289 = sbr.rel (%p287) target = $region102
        $region101: #{tpu_custom_call.1} parent=15 // pred_region
          %s290 = sand.u32 %s96, 1
          %s291 = sand.u32 %s96, 1
          %s292 = smul.addr %s291, 16
          %s293 = scalar_lea.vmem [#allocation7], %s292
          %s294 = smul.addr %s16, 16
          %s295 = sadd.s32 %s18, %s294
          %s296 = smul.addr %s295, 4
          %s297 = scalar_lea.vmem %s2, %s296
          // Predicated region
          $region103: #{tpu_custom_call.1} parent=101 // pred_check
            _
          $region104: #{tpu_custom_call.1} parent=101 // pred_check_branch
            %299 = sbr.rel (0) target = $region106
          $region105: #{tpu_custom_call.1} parent=101 // pred_region
            // Predicated region
            $region107: #{tpu_custom_call.1} parent=105 // pred_check
              _
            $region108: #{tpu_custom_call.1} parent=105 // pred_check_branch
              %301 = sbr.rel target = $region110
            $region109: #{tpu_custom_call.1} parent=105 // pred_region
              // Predicated region
              $region122: #{tpu_custom_call.1} parent=109 // pred_check
                _
              $region123: #{tpu_custom_call.1} parent=109 // pred_check_branch
                %323 = sbr.rel (0) target = $region125
              $region124: #{tpu_custom_call.1} parent=109 // pred_region
                loop: start=0, step=1, limit=1
                $region126: #{tpu_custom_call.1} parent=124 // loop_pre_header
                  _
                $region127: #{tpu_custom_call.1} parent=124 // loop_header
                  %s325 = sphi 0, %s329
                  %p326 = scmp.ge.s32.totalorder %s325, 1
                  %s330 = sphi %s297, %s297
                  %s331 = sphi %s293, %s293
                $region128: #{tpu_custom_call.1} parent=124 // loop_header_branch
                  %328 = sbr.rel (%p326) target = $region132
                $region129: #{tpu_custom_call.1} parent=124 // loop_body
                  _
                $region130: #{tpu_custom_call.1} parent=124 // loop_footer
                  %s329 = sadd.s32 1, %s325
                $region131: #{tpu_custom_call.1} parent=124 // loop_footer_branch
                  %324 = sbr.rel target = $region127
                $region132: #{tpu_custom_call.1} parent=124 // loop_exit
                  _
                %s333 = ssub.s32 16, 1
                loop: start=0, step=1, limit=1
                $region133: #{tpu_custom_call.1} parent=124 // loop_pre_header
                  _
                $region134: #{tpu_custom_call.1} parent=124 // loop_header
                  %s335 = sphi 0, %s339
                  %p336 = scmp.ge.s32.totalorder %s335, 1
                  %s340 = sphi %s297, %s297
                  %s341 = sphi %s293, %s293
                $region135: #{tpu_custom_call.1} parent=124 // loop_header_branch
                  %338 = sbr.rel (%p336) target = $region139
                $region136: #{tpu_custom_call.1} parent=124 // loop_body
                  %v342 = vld [vmem:[%s340] sm:%s333]
                  %343 = vst [vmem:[%s341] sm:%s333] %v342
                  %v344 = vld [vmem:[%s340 + $0x10] sm:%s333]
                  %345 = vst [vmem:[%s341 + $0x4] sm:%s333] %v344
                  %v346 = vld [vmem:[%s340 + $0x20] sm:%s333]
                  %347 = vst [vmem:[%s341 + $0x8] sm:%s333] %v346
                  %v348 = vld [vmem:[%s340 + $0x30] sm:%s333]
                  %349 = vst [vmem:[%s341 + $0xc] sm:%s333] %v348
                $region137: #{tpu_custom_call.1} parent=124 // loop_footer
                  %s339 = sadd.s32 1, %s335
                $region138: #{tpu_custom_call.1} parent=124 // loop_footer_branch
                  %334 = sbr.rel target = $region134
                $region139: #{tpu_custom_call.1} parent=124 // loop_exit
                  _
              $region125: #{tpu_custom_call.1} parent=109 // pred_fallthru
                _
            $region110: #{tpu_custom_call.1} parent=105 // pred_fallthru
              _
            // Predicated region
            $region111: #{tpu_custom_call.1} parent=105 // pred_check
              _
            $region112: #{tpu_custom_call.1} parent=105 // pred_check_branch
              %303 = sbr.rel (0) target = $region114
            $region113: #{tpu_custom_call.1} parent=105 // pred_region
              %s305 = ssub.s32 16, 1
              loop: start=0, step=1, limit=1
              $region115: #{tpu_custom_call.1} parent=113 // loop_pre_header
                _
              $region116: #{tpu_custom_call.1} parent=113 // loop_header
                %s307 = sphi 0, %s311
                %p308 = scmp.ge.s32.totalorder %s307, 1
                %s312 = sphi %s297, %s297
                %s313 = sphi %s293, %s293
              $region117: #{tpu_custom_call.1} parent=113 // loop_header_branch
                %310 = sbr.rel (%p308) target = $region121
              $region118: #{tpu_custom_call.1} parent=113 // loop_body
                %v314 = vld [vmem:[%s312] sm:%s305]
                %315 = vst [vmem:[%s313] sm:%s305] %v314
                %v316 = vld [vmem:[%s312 + $0x10] sm:%s305]
                %317 = vst [vmem:[%s313 + $0x4] sm:%s305] %v316
                %v318 = vld [vmem:[%s312 + $0x20] sm:%s305]
                %319 = vst [vmem:[%s313 + $0x8] sm:%s305] %v318
                %v320 = vld [vmem:[%s312 + $0x30] sm:%s305]
                %321 = vst [vmem:[%s313 + $0xc] sm:%s305] %v320
              $region119: #{tpu_custom_call.1} parent=113 // loop_footer
                %s311 = sadd.s32 1, %s307
              $region120: #{tpu_custom_call.1} parent=113 // loop_footer_branch
                %306 = sbr.rel target = $region116
              $region121: #{tpu_custom_call.1} parent=113 // loop_exit
                _
            $region114: #{tpu_custom_call.1} parent=105 // pred_fallthru
              _
          $region106: #{tpu_custom_call.1} parent=101 // pred_fallthru
            _
          %350 = vnop
        $region102: #{tpu_custom_call.1} parent=15 // pred_fallthru
          _
      $region16: #{tpu_custom_call.1} parent=5 // pred_fallthru
        _
      %p351 = scmp.le.s32.totalorder 1, %s9
      %p352 = scmp.lt.s32.totalorder %s9, 33
      %p353 = pnand %p351, %p352
      %p354 = pneg %p353
      // Predicated region
      $region140: #{tpu_custom_call.1} parent=5 // pred_check
        _
      $region141: #{tpu_custom_call.1} parent=5 // pred_check_branch
        %356 = sbr.rel (%p353) target = $region143
      $region142: #{tpu_custom_call.1} parent=5 // pred_region
        %s357 = ssub.s32 %s9, 1
        %s358 = sand.u32 %s43, 1
        %s359 = sand.u32 %s43, 1
        %s360 = smul.addr %s359, 16
        %s361 = scalar_lea.vmem [#allocation5], %s360
        // Predicated region
        $region144: #{tpu_custom_call.1} parent=142 // pred_check
          %p362 = pneg %p56
        $region145: #{tpu_custom_call.1} parent=142 // pred_check_branch
          %364 = sbr.rel (%p362) target = $region147
        $region146: #{tpu_custom_call.1} parent=142 // pred_region
          _
        $region147: #{tpu_custom_call.1} parent=142 // pred_fallthru
          _
        %s365 = sand.u32 %s71, 1
        %s366 = sand.u32 %s71, 1
        %s367 = smul.addr %s366, 16
        %s368 = scalar_lea.vmem [#allocation6], %s367
        // Predicated region
        $region148: #{tpu_custom_call.1} parent=142 // pred_check
          %p369 = pneg %p84
        $region149: #{tpu_custom_call.1} parent=142 // pred_check_branch
          %371 = sbr.rel (%p369) target = $region151
        $region150: #{tpu_custom_call.1} parent=142 // pred_region
          _
        $region151: #{tpu_custom_call.1} parent=142 // pred_fallthru
          _
        %s372 = sand.u32 %s99, 1
        %s373 = sand.u32 %s99, 1
        %s374 = smul.addr %s373, 16
        %s375 = scalar_lea.vmem [#allocation7], %s374
        // Predicated region
        $region152: #{tpu_custom_call.1} parent=142 // pred_check
          %p376 = pneg %p112
        $region153: #{tpu_custom_call.1} parent=142 // pred_check_branch
          %378 = sbr.rel (%p376) target = $region155
        $region154: #{tpu_custom_call.1} parent=142 // pred_region
          _
        $region155: #{tpu_custom_call.1} parent=142 // pred_fallthru
          _
        %s379 = sand.u32 %s43, 1
        %s380 = sand.u32 %s43, 1
        %s381 = smul.addr %s380, 16
        %s382 = scalar_lea.vmem [#allocation5], %s381
        %p383 = pneg %p56
        %p384 = pneg %p53
        %s385 = sand.u32 %s71, 1
        %s386 = sand.u32 %s71, 1
        %s387 = smul.addr %s386, 16
        %s388 = scalar_lea.vmem [#allocation6], %s387
        %p389 = pneg %p84
        %p390 = pneg %p81
        %s391 = sand.u32 %s99, 1
        %s392 = sand.u32 %s99, 1
        %s393 = smul.addr %s392, 16
        %s394 = scalar_lea.vmem [#allocation7], %s393
        %p395 = pneg %p112
        %p396 = pneg %p109
        %p397 = pneg %p140
        %p398 = pneg %p137
        %s399 = sand.u32 %s127, 1
        %s400 = sand.u32 %s127, 1
        %s401 = smul.addr %s400, 16
        %s402 = scalar_lea.vmem [#allocation8], %s401
        %p404 = scmp.eq.s32.totalorder %s21, 0
        // Predicated region
        $region156: #{tpu_custom_call.1} parent=142 // pred_check
          %p405 = pneg %p404
        $region157: #{tpu_custom_call.1} parent=142 // pred_check_branch
          %407 = sbr.rel (%p405) target = $region159
        $region158: #{tpu_custom_call.1} parent=142 // pred_region
          %vm408 = vcmask 7168
          %409 = vst.msk [vmem:[#allocation2] sm:$0xff] %vm408, -inf
          %410 = vst.msk [vmem:[#allocation2 + $0x8] sm:$0xff] %vm408, -inf
          %411 = vst.msk [vmem:[#allocation2 + $0x10] sm:$0xff] %vm408, -inf
          %412 = vst.msk [vmem:[#allocation2 + $0x18] sm:$0xff] %vm408, -inf
          %413 = vst.msk [vmem:[#allocation3] sm:$0xff] %vm408, 0.0
          %414 = vst.msk [vmem:[#allocation3 + $0x8] sm:$0xff] %vm408, 0.0
          %415 = vst.msk [vmem:[#allocation3 + $0x10] sm:$0xff] %vm408, 0.0
          %416 = vst.msk [vmem:[#allocation3 + $0x18] sm:$0xff] %vm408, 0.0
          %vm417 = vcmask 64512
          %418 = vst.msk [vmem:[#allocation4] sm:$0xff] %vm417, 0.0
          %419 = vst.msk [vmem:[#allocation4 + $0x8] sm:$0xff] %vm417, 0.0
          %420 = vst.msk [vmem:[#allocation4 + $0x10] sm:$0xff] %vm417, 0.0
          %421 = vst.msk [vmem:[#allocation4 + $0x18] sm:$0xff] %vm417, 0.0
        $region159: #{tpu_custom_call.1} parent=142 // pred_fallthru
          _
        %v422 = vld [vmem:[%s361] sm:$0xf]
        %v423 = vld [vmem:[%s361 + $0x4] sm:$0xf]
        %v424 = vld [vmem:[%s361 + $0x8] sm:$0xf]
        %v425 = vld [vmem:[%s361 + $0xc] sm:$0xf]
        %v426 = vld [vmem:[%s368] sm:$0xf]
        %v427 = vld [vmem:[%s368 + $0x4] sm:$0xf]
        %v428 = vld [vmem:[%s368 + $0x8] sm:$0xf]
        %v429 = vld [vmem:[%s368 + $0xc] sm:$0xf]
        %v430 = vld [vmem:[%s375] sm:$0xf]
        %v431 = vld [vmem:[%s375 + $0x4] sm:$0xf]
        %v432 = vld [vmem:[%s375 + $0x8] sm:$0xf]
        %v433 = vld [vmem:[%s375 + $0xc] sm:$0xf]
        %vm434 = vcmask 64512
        %v436 = vsel %vm434, %v422, 0
        %v439 = vsel %vm434, %v426, 0
        %441 = vmatprep.subr.bf16.mxu0 0
        %442 = vmatpush1.bf16.xpose.msra.mxu0 0
        %443 = vmatprep.subr.bf16.mxu0 0
        %444 = vmatpush1.bf16.xpose.msra.mxu0 0
        %445 = vmatprep.subr.bf16.mxu0 0
        %446 = vmatpush1.bf16.xpose.msra.mxu0 0
        %447 = vmatprep.subr.bf16.mxu0 0
        %448 = vmatpush1.bf16.xpose.msra.mxu0 0
        %449 = vmatprep.subr.bf16.mxu0 0
        %450 = vmatpush1.bf16.xpose.msra.mxu0 0
        %451 = vmatprep.subr.bf16.mxu0 0
        %452 = vmatpush1.bf16.xpose.msra.mxu0 0
        %453 = vmatprep.subr.bf16.mxu0 0
        %454 = vmatpush1.bf16.xpose.msra.mxu0 0
        %455 = vmatprep.subr.bf16.mxu0 0
        %456 = vmatpush1.bf16.xpose.msra.mxu0 %v439
        %457 = vmatprep.subr.bf16.mxu0 0
        %458 = vmatpush2.bf16.xpose.msra.mxu0 0
        %459 = vmatprep.subr.bf16.mxu0 0
        %460 = vmatpush2.bf16.xpose.msra.mxu0 0
        %461 = vmatprep.subr.bf16.mxu0 0
        %462 = vmatpush2.bf16.xpose.msra.mxu0 0
        %463 = vmatprep.subr.bf16.mxu0 0
        %464 = vmatpush2.bf16.xpose.msra.mxu0 0
        %465 = vmatprep.subr.bf16.mxu0 0
        %466 = vmatpush2.bf16.xpose.msra.mxu0 0
        %467 = vmatprep.subr.bf16.mxu0 0
        %468 = vmatpush2.bf16.xpose.msra.mxu0 0
        %469 = vmatprep.subr.bf16.mxu0 0
        %470 = vmatpush2.bf16.xpose.msra.mxu0 0
        %471 = vmatprep.subr.bf16.mxu0 0
        %472 = vmatpush2.bf16.xpose.msra.mxu0 0
        %473 = vmatprep.mubr.bf16.mxu0 0
        %474 = vmatmul.mubr.bf16.gmra.mxu0 %v436
        %v475 = vpop.f32.mrf.mxu0
        %v476 = vadd.f32 0.0, %v475
        %v477 = vpop.f32.mrf.mxu0
        %v478 = vpop.f32.mrf.mxu0
        %v479 = vpop.f32.mrf.mxu0
        %480 = vdwg.mxu0
        %v482 = vsel %vm434, %v423, 0
        %v485 = vsel %vm434, %v427, 0
        %487 = vmatprep.subr.bf16.mxu0 0
        %488 = vmatpush1.bf16.xpose.msra.mxu0 0
        %489 = vmatprep.subr.bf16.mxu0 0
        %490 = vmatpush1.bf16.xpose.msra.mxu0 0
        %491 = vmatprep.subr.bf16.mxu0 0
        %492 = vmatpush1.bf16.xpose.msra.mxu0 0
        %493 = vmatprep.subr.bf16.mxu0 0
        %494 = vmatpush1.bf16.xpose.msra.mxu0 0
        %495 = vmatprep.subr.bf16.mxu0 0
        %496 = vmatpush1.bf16.xpose.msra.mxu0 0
        %497 = vmatprep.subr.bf16.mxu0 0
        %498 = vmatpush1.bf16.xpose.msra.mxu0 0
        %499 = vmatprep.subr.bf16.mxu0 0
        %500 = vmatpush1.bf16.xpose.msra.mxu0 0
        %501 = vmatprep.subr.bf16.mxu0 0
        %502 = vmatpush1.bf16.xpose.msra.mxu0 %v485
        %503 = vmatprep.subr.bf16.mxu0 0
        %504 = vmatpush2.bf16.xpose.msra.mxu0 0
        %505 = vmatprep.subr.bf16.mxu0 0
        %506 = vmatpush2.bf16.xpose.msra.mxu0 0
        %507 = vmatprep.subr.bf16.mxu0 0
        %508 = vmatpush2.bf16.xpose.msra.mxu0 0
        %509 = vmatprep.subr.bf16.mxu0 0
        %510 = vmatpush2.bf16.xpose.msra.mxu0 0
        %511 = vmatprep.subr.bf16.mxu0 0
        %512 = vmatpush2.bf16.xpose.msra.mxu0 0
        %513 = vmatprep.subr.bf16.mxu0 0
        %514 = vmatpush2.bf16.xpose.msra.mxu0 0
        %515 = vmatprep.subr.bf16.mxu0 0
        %516 = vmatpush2.bf16.xpose.msra.mxu0 0
        %517 = vmatprep.subr.bf16.mxu0 0
        %518 = vmatpush2.bf16.xpose.msra.mxu0 0
        %519 = vmatprep.mubr.bf16.mxu0 0
        %520 = vmatmul.mubr.bf16.gmra.mxu0 %v482
        %v521 = vpop.f32.mrf.mxu0
        %v522 = vadd.f32 0.0, %v521
        %v523 = vpop.f32.mrf.mxu0
        %v524 = vpop.f32.mrf.mxu0
        %v525 = vpop.f32.mrf.mxu0
        %526 = vdwg.mxu0
        %v528 = vsel %vm434, %v424, 0
        %v531 = vsel %vm434, %v428, 0
        %533 = vmatprep.subr.bf16.mxu0 0
        %534 = vmatpush1.bf16.xpose.msra.mxu0 0
        %535 = vmatprep.subr.bf16.mxu0 0
        %536 = vmatpush1.bf16.xpose.msra.mxu0 0
        %537 = vmatprep.subr.bf16.mxu0 0
        %538 = vmatpush1.bf16.xpose.msra.mxu0 0
        %539 = vmatprep.subr.bf16.mxu0 0
        %540 = vmatpush1.bf16.xpose.msra.mxu0 0
        %541 = vmatprep.subr.bf16.mxu0 0
        %542 = vmatpush1.bf16.xpose.msra.mxu0 0
        %543 = vmatprep.subr.bf16.mxu0 0
        %544 = vmatpush1.bf16.xpose.msra.mxu0 0
        %545 = vmatprep.subr.bf16.mxu0 0
        %546 = vmatpush1.bf16.xpose.msra.mxu0 0
        %547 = vmatprep.subr.bf16.mxu0 0
        %548 = vmatpush1.bf16.xpose.msra.mxu0 %v531
        %549 = vmatprep.subr.bf16.mxu0 0
        %550 = vmatpush2.bf16.xpose.msra.mxu0 0
        %551 = vmatprep.subr.bf16.mxu0 0
        %552 = vmatpush2.bf16.xpose.msra.mxu0 0
        %553 = vmatprep.subr.bf16.mxu0 0
        %554 = vmatpush2.bf16.xpose.msra.mxu0 0
        %555 = vmatprep.subr.bf16.mxu0 0
        %556 = vmatpush2.bf16.xpose.msra.mxu0 0
        %557 = vmatprep.subr.bf16.mxu0 0
        %558 = vmatpush2.bf16.xpose.msra.mxu0 0
        %559 = vmatprep.subr.bf16.mxu0 0
        %560 = vmatpush2.bf16.xpose.msra.mxu0 0
        %561 = vmatprep.subr.bf16.mxu0 0
        %562 = vmatpush2.bf16.xpose.msra.mxu0 0
        %563 = vmatprep.subr.bf16.mxu0 0
        %564 = vmatpush2.bf16.xpose.msra.mxu0 0
        %565 = vmatprep.mubr.bf16.mxu0 0
        %566 = vmatmul.mubr.bf16.gmra.mxu0 %v528
        %v567 = vpop.f32.mrf.mxu0
        %v568 = vadd.f32 0.0, %v567
        %v569 = vpop.f32.mrf.mxu0
        %v570 = vpop.f32.mrf.mxu0
        %v571 = vpop.f32.mrf.mxu0
        %572 = vdwg.mxu0
        %v574 = vsel %vm434, %v425, 0
        %v577 = vsel %vm434, %v429, 0
        %579 = vmatprep.subr.bf16.mxu0 0
        %580 = vmatpush1.bf16.xpose.msra.mxu0 0
        %581 = vmatprep.subr.bf16.mxu0 0
        %582 = vmatpush1.bf16.xpose.msra.mxu0 0
        %583 = vmatprep.subr.bf16.mxu0 0
        %584 = vmatpush1.bf16.xpose.msra.mxu0 0
        %585 = vmatprep.subr.bf16.mxu0 0
        %586 = vmatpush1.bf16.xpose.msra.mxu0 0
        %587 = vmatprep.subr.bf16.mxu0 0
        %588 = vmatpush1.bf16.xpose.msra.mxu0 0
        %589 = vmatprep.subr.bf16.mxu0 0
        %590 = vmatpush1.bf16.xpose.msra.mxu0 0
        %591 = vmatprep.subr.bf16.mxu0 0
        %592 = vmatpush1.bf16.xpose.msra.mxu0 0
        %593 = vmatprep.subr.bf16.mxu0 0
        %594 = vmatpush1.bf16.xpose.msra.mxu0 %v577
        %595 = vmatprep.subr.bf16.mxu0 0
        %596 = vmatpush2.bf16.xpose.msra.mxu0 0
        %597 = vmatprep.subr.bf16.mxu0 0
        %598 = vmatpush2.bf16.xpose.msra.mxu0 0
        %599 = vmatprep.subr.bf16.mxu0 0
        %600 = vmatpush2.bf16.xpose.msra.mxu0 0
        %601 = vmatprep.subr.bf16.mxu0 0
        %602 = vmatpush2.bf16.xpose.msra.mxu0 0
        %603 = vmatprep.subr.bf16.mxu0 0
        %604 = vmatpush2.bf16.xpose.msra.mxu0 0
        %605 = vmatprep.subr.bf16.mxu0 0
        %606 = vmatpush2.bf16.xpose.msra.mxu0 0
        %607 = vmatprep.subr.bf16.mxu0 0
        %608 = vmatpush2.bf16.xpose.msra.mxu0 0
        %609 = vmatprep.subr.bf16.mxu0 0
        %610 = vmatpush2.bf16.xpose.msra.mxu0 0
        %611 = vmatprep.mubr.bf16.mxu0 0
        %612 = vmatmul.mubr.bf16.gmra.mxu0 %v574
        %v613 = vpop.f32.mrf.mxu0
        %v614 = vadd.f32 0.0, %v613
        %v615 = vpop.f32.mrf.mxu0
        %v616 = vpop.f32.mrf.mxu0
        %v617 = vpop.f32.mrf.mxu0
        %618 = vdwg.mxu0
        %s619 = smul.u32 %s20, 8
        %v620 = vlaneseq
        %v621 = vshrl.u32 %v620, 7
        %v622 = vstv %s619
        %v623 = vadd.s32 %v622, %v621
        %s624 = smul.u32 %s21, 8
        %v625 = vlaneseq
        %v626 = vand.u32 %v625, 127
        %v627 = vstv %s624
        %v628 = vadd.s32 %v627, %v626
        %vm629 = vcmp.eq.s32.totalorder %v623, %v628
        %v630 = vsel %vm629, 1, 0
        %vm631 = vcmp.eq.s32.totalorder %v630, 1
        %v632 = vsel %vm631, -50000.0, %v476
        %v633 = vsel %vm631, -50000.0, %v522
        %v634 = vsel %vm631, -50000.0, %v568
        %v635 = vsel %vm631, -50000.0, %v614
        %v636 = vld [vmem:[#allocation2] sm:$0xff]
        %v637 = vld [vmem:[#allocation2 + $0x8] sm:$0xff]
        %v638 = vld [vmem:[#allocation2 + $0x10] sm:$0xff]
        %v639 = vld [vmem:[#allocation2 + $0x18] sm:$0xff]
        %v640 = vsel %vm434, %v632, -inf
        %641 = vmax.xlane.f32.xlu0 %v640
        %v642 = vpop.xlane.xlu0 %641
        %v643 = vsel %vm434, %v633, -inf
        %644 = vmax.xlane.f32.xlu0 %v643
        %v645 = vpop.xlane.xlu0 %644
        %v646 = vsel %vm434, %v634, -inf
        %647 = vmax.xlane.f32.xlu0 %v646
        %v648 = vpop.xlane.xlu0 %647
        %v649 = vsel %vm434, %v635, -inf
        %650 = vmax.xlane.f32.xlu0 %v649
        %v651 = vpop.xlane.xlu0 %650
        %v652 = vmax.f32 %v636, %v642
        %v653 = vmax.f32 %v637, %v645
        %v654 = vmax.f32 %v638, %v648
        %v655 = vmax.f32 %v639, %v651
        %v656 = vsub.f32 %v636, %v652
        %v657 = vsub.f32 %v637, %v653
        %v658 = vsub.f32 %v638, %v654
        %v659 = vsub.f32 %v639, %v655
        %v660 = vmul.f32 %v656, 1.442695
        %v661 = vpow.pop %v660
        %v662 = vmul.f32 %v657, 1.442695
        %v663 = vpow.pop %v662
        %v664 = vmul.f32 %v658, 1.442695
        %v665 = vpow.pop %v664
        %v666 = vmul.f32 %v659, 1.442695
        %v667 = vpow.pop %v666
        %669 = vset.pattern.permute.xlu0 0
        %670 = vperm.xlu0 %669, %v652
        %v671 = vpop.permute.xlu0 %670
        %674 = vset.pattern.permute.xlu0 0
        %675 = vperm.xlu0 %674, %v653
        %v676 = vpop.permute.xlu0 %675
        %679 = vset.pattern.permute.xlu0 0
        %680 = vperm.xlu0 %679, %v654
        %v681 = vpop.permute.xlu0 %680
        %684 = vset.pattern.permute.xlu0 0
        %685 = vperm.xlu0 %684, %v655
        %v686 = vpop.permute.xlu0 %685
        %v688 = vsub.f32 %v632, %v671
        %v689 = vsub.f32 %v633, %v676
        %v690 = vsub.f32 %v634, %v681
        %v691 = vsub.f32 %v635, %v686
        %v692 = vmul.f32 %v688, 1.442695
        %v693 = vpow.pop %v692
        %v694 = vmul.f32 %v689, 1.442695
        %v695 = vpow.pop %v694
        %v696 = vmul.f32 %v690, 1.442695
        %v697 = vpow.pop %v696
        %v698 = vmul.f32 %v691, 1.442695
        %v699 = vpow.pop %v698
        %v700 = vld [vmem:[#allocation3] sm:$0xff]
        %v701 = vld [vmem:[#allocation3 + $0x8] sm:$0xff]
        %v702 = vld [vmem:[#allocation3 + $0x10] sm:$0xff]
        %v703 = vld [vmem:[#allocation3 + $0x18] sm:$0xff]
        %v704 = vmul.f32 %v661, %v700
        %v705 = vmul.f32 %v663, %v701
        %v706 = vmul.f32 %v665, %v702
        %v707 = vmul.f32 %v667, %v703
        %v708 = vsel %vm434, %v693, 0.0
        %709 = vadd.xlane.f32.xlu0 %v708
        %v710 = vpop.xlane.xlu0 %709
        %v711 = vsel %vm434, %v695, 0.0
        %712 = vadd.xlane.f32.xlu0 %v711
        %v713 = vpop.xlane.xlu0 %712
        %v714 = vsel %vm434, %v697, 0.0
        %715 = vadd.xlane.f32.xlu0 %v714
        %v716 = vpop.xlane.xlu0 %715
        %v717 = vsel %vm434, %v699, 0.0
        %718 = vadd.xlane.f32.xlu0 %v717
        %v719 = vpop.xlane.xlu0 %718
        %v720 = vadd.f32 %v704, %v710
        %v721 = vadd.f32 %v705, %v713
        %v722 = vadd.f32 %v706, %v716
        %v723 = vadd.f32 %v707, %v719
        %vm724 = vcmask 7168
        %725 = vst.msk [vmem:[#allocation3] sm:$0xff] %vm724, %v720
        %726 = vst.msk [vmem:[#allocation3 + $0x8] sm:$0xff] %vm724, %v721
        %727 = vst.msk [vmem:[#allocation3 + $0x10] sm:$0xff] %vm724, %v722
        %728 = vst.msk [vmem:[#allocation3 + $0x18] sm:$0xff] %vm724, %v723
        %v729 = vpack.c.bf16 %v693, %v693
        %v730 = vpack.c.bf16 %v695, %v695
        %v731 = vpack.c.bf16 %v697, %v697
        %v732 = vpack.c.bf16 %v699, %v699
        %v734 = vsel %vm434, %v729, 0
        %vm736 = vcmask 1043456
        %v738 = vsel %vm736, %v430, 0
        %740 = vmatprep.subr.bf16.mxu0 0
        %741 = vmatpush1.bf16.msra.mxu0 0
        %742 = vmatprep.subr.bf16.mxu0 0
        %743 = vmatpush1.bf16.msra.mxu0 0
        %744 = vmatprep.subr.bf16.mxu0 0
        %745 = vmatpush1.bf16.msra.mxu0 0
        %746 = vmatprep.subr.bf16.mxu0 0
        %747 = vmatpush1.bf16.msra.mxu0 0
        %748 = vmatprep.subr.bf16.mxu0 0
        %749 = vmatpush1.bf16.msra.mxu0 0
        %750 = vmatprep.subr.bf16.mxu0 0
        %751 = vmatpush1.bf16.msra.mxu0 0
        %752 = vmatprep.subr.bf16.mxu0 0
        %753 = vmatpush1.bf16.msra.mxu0 0
        %754 = vmatprep.subr.bf16.mxu0 0
        %755 = vmatpush1.bf16.msra.mxu0 %v738
        %756 = vmatprep.subr.bf16.mxu0 0
        %757 = vmatpush2.bf16.msra.mxu0 0
        %758 = vmatprep.subr.bf16.mxu0 0
        %759 = vmatpush2.bf16.msra.mxu0 0
        %760 = vmatprep.subr.bf16.mxu0 0
        %761 = vmatpush2.bf16.msra.mxu0 0
        %762 = vmatprep.subr.bf16.mxu0 0
        %763 = vmatpush2.bf16.msra.mxu0 0
        %764 = vmatprep.subr.bf16.mxu0 0
        %765 = vmatpush2.bf16.msra.mxu0 0
        %766 = vmatprep.subr.bf16.mxu0 0
        %767 = vmatpush2.bf16.msra.mxu0 0
        %768 = vmatprep.subr.bf16.mxu0 0
        %769 = vmatpush2.bf16.msra.mxu0 0
        %770 = vmatprep.subr.bf16.mxu0 0
        %771 = vmatpush2.bf16.msra.mxu0 0
        %772 = vmatprep.mubr.bf16.mxu0 0
        %773 = vmatmul.mubr.bf16.gmra.mxu0 %v734
        %v774 = vpop.f32.mrf.mxu0
        %v775 = vadd.f32 0.0, %v774
        %v776 = vpop.f32.mrf.mxu0
        %v777 = vpop.f32.mrf.mxu0
        %v778 = vpop.f32.mrf.mxu0
        %779 = vdwg.mxu0
        %v781 = vsel %vm434, %v730, 0
        %v784 = vsel %vm736, %v431, 0
        %786 = vmatprep.subr.bf16.mxu0 0
        %787 = vmatpush1.bf16.msra.mxu0 0
        %788 = vmatprep.subr.bf16.mxu0 0
        %789 = vmatpush1.bf16.msra.mxu0 0
        %790 = vmatprep.subr.bf16.mxu0 0
        %791 = vmatpush1.bf16.msra.mxu0 0
        %792 = vmatprep.subr.bf16.mxu0 0
        %793 = vmatpush1.bf16.msra.mxu0 0
        %794 = vmatprep.subr.bf16.mxu0 0
        %795 = vmatpush1.bf16.msra.mxu0 0
        %796 = vmatprep.subr.bf16.mxu0 0
        %797 = vmatpush1.bf16.msra.mxu0 0
        %798 = vmatprep.subr.bf16.mxu0 0
        %799 = vmatpush1.bf16.msra.mxu0 0
        %800 = vmatprep.subr.bf16.mxu0 0
        %801 = vmatpush1.bf16.msra.mxu0 %v784
        %802 = vmatprep.subr.bf16.mxu0 0
        %803 = vmatpush2.bf16.msra.mxu0 0
        %804 = vmatprep.subr.bf16.mxu0 0
        %805 = vmatpush2.bf16.msra.mxu0 0
        %806 = vmatprep.subr.bf16.mxu0 0
        %807 = vmatpush2.bf16.msra.mxu0 0
        %808 = vmatprep.subr.bf16.mxu0 0
        %809 = vmatpush2.bf16.msra.mxu0 0
        %810 = vmatprep.subr.bf16.mxu0 0
        %811 = vmatpush2.bf16.msra.mxu0 0
        %812 = vmatprep.subr.bf16.mxu0 0
        %813 = vmatpush2.bf16.msra.mxu0 0
        %814 = vmatprep.subr.bf16.mxu0 0
        %815 = vmatpush2.bf16.msra.mxu0 0
        %816 = vmatprep.subr.bf16.mxu0 0
        %817 = vmatpush2.bf16.msra.mxu0 0
        %818 = vmatprep.mubr.bf16.mxu0 0
        %819 = vmatmul.mubr.bf16.gmra.mxu0 %v781
        %v820 = vpop.f32.mrf.mxu0
        %v821 = vadd.f32 0.0, %v820
        %v822 = vpop.f32.mrf.mxu0
        %v823 = vpop.f32.mrf.mxu0
        %v824 = vpop.f32.mrf.mxu0
        %825 = vdwg.mxu0
        %v827 = vsel %vm434, %v731, 0
        %v830 = vsel %vm736, %v432, 0
        %832 = vmatprep.subr.bf16.mxu0 0
        %833 = vmatpush1.bf16.msra.mxu0 0
        %834 = vmatprep.subr.bf16.mxu0 0
        %835 = vmatpush1.bf16.msra.mxu0 0
        %836 = vmatprep.subr.bf16.mxu0 0
        %837 = vmatpush1.bf16.msra.mxu0 0
        %838 = vmatprep.subr.bf16.mxu0 0
        %839 = vmatpush1.bf16.msra.mxu0 0
        %840 = vmatprep.subr.bf16.mxu0 0
        %841 = vmatpush1.bf16.msra.mxu0 0
        %842 = vmatprep.subr.bf16.mxu0 0
        %843 = vmatpush1.bf16.msra.mxu0 0
        %844 = vmatprep.subr.bf16.mxu0 0
        %845 = vmatpush1.bf16.msra.mxu0 0
        %846 = vmatprep.subr.bf16.mxu0 0
        %847 = vmatpush1.bf16.msra.mxu0 %v830
        %848 = vmatprep.subr.bf16.mxu0 0
        %849 = vmatpush2.bf16.msra.mxu0 0
        %850 = vmatprep.subr.bf16.mxu0 0
        %851 = vmatpush2.bf16.msra.mxu0 0
        %852 = vmatprep.subr.bf16.mxu0 0
        %853 = vmatpush2.bf16.msra.mxu0 0
        %854 = vmatprep.subr.bf16.mxu0 0
        %855 = vmatpush2.bf16.msra.mxu0 0
        %856 = vmatprep.subr.bf16.mxu0 0
        %857 = vmatpush2.bf16.msra.mxu0 0
        %858 = vmatprep.subr.bf16.mxu0 0
        %859 = vmatpush2.bf16.msra.mxu0 0
        %860 = vmatprep.subr.bf16.mxu0 0
        %861 = vmatpush2.bf16.msra.mxu0 0
        %862 = vmatprep.subr.bf16.mxu0 0
        %863 = vmatpush2.bf16.msra.mxu0 0
        %864 = vmatprep.mubr.bf16.mxu0 0
        %865 = vmatmul.mubr.bf16.gmra.mxu0 %v827
        %v866 = vpop.f32.mrf.mxu0
        %v867 = vadd.f32 0.0, %v866
        %v868 = vpop.f32.mrf.mxu0
        %v869 = vpop.f32.mrf.mxu0
        %v870 = vpop.f32.mrf.mxu0
        %871 = vdwg.mxu0
        %v873 = vsel %vm434, %v732, 0
        %v876 = vsel %vm736, %v433, 0
        %878 = vmatprep.subr.bf16.mxu0 0
        %879 = vmatpush1.bf16.msra.mxu0 0
        %880 = vmatprep.subr.bf16.mxu0 0
        %881 = vmatpush1.bf16.msra.mxu0 0
        %882 = vmatprep.subr.bf16.mxu0 0
        %883 = vmatpush1.bf16.msra.mxu0 0
        %884 = vmatprep.subr.bf16.mxu0 0
        %885 = vmatpush1.bf16.msra.mxu0 0
        %886 = vmatprep.subr.bf16.mxu0 0
        %887 = vmatpush1.bf16.msra.mxu0 0
        %888 = vmatprep.subr.bf16.mxu0 0
        %889 = vmatpush1.bf16.msra.mxu0 0
        %890 = vmatprep.subr.bf16.mxu0 0
        %891 = vmatpush1.bf16.msra.mxu0 0
        %892 = vmatprep.subr.bf16.mxu0 0
        %893 = vmatpush1.bf16.msra.mxu0 %v876
        %894 = vmatprep.subr.bf16.mxu0 0
        %895 = vmatpush2.bf16.msra.mxu0 0
        %896 = vmatprep.subr.bf16.mxu0 0
        %897 = vmatpush2.bf16.msra.mxu0 0
        %898 = vmatprep.subr.bf16.mxu0 0
        %899 = vmatpush2.bf16.msra.mxu0 0
        %900 = vmatprep.subr.bf16.mxu0 0
        %901 = vmatpush2.bf16.msra.mxu0 0
        %902 = vmatprep.subr.bf16.mxu0 0
        %903 = vmatpush2.bf16.msra.mxu0 0
        %904 = vmatprep.subr.bf16.mxu0 0
        %905 = vmatpush2.bf16.msra.mxu0 0
        %906 = vmatprep.subr.bf16.mxu0 0
        %907 = vmatpush2.bf16.msra.mxu0 0
        %908 = vmatprep.subr.bf16.mxu0 0
        %909 = vmatpush2.bf16.msra.mxu0 0
        %910 = vmatprep.mubr.bf16.mxu0 0
        %911 = vmatmul.mubr.bf16.gmra.mxu0 %v873
        %v912 = vpop.f32.mrf.mxu0
        %v913 = vadd.f32 0.0, %v912
        %v914 = vpop.f32.mrf.mxu0
        %v915 = vpop.f32.mrf.mxu0
        %v916 = vpop.f32.mrf.mxu0
        %917 = vdwg.mxu0
        %v918 = vld [vmem:[#allocation4] sm:$0xff]
        %v919 = vld [vmem:[#allocation4 + $0x8] sm:$0xff]
        %v920 = vld [vmem:[#allocation4 + $0x10] sm:$0xff]
        %v921 = vld [vmem:[#allocation4 + $0x18] sm:$0xff]
        %923 = vset.pattern.permute.xlu0 0
        %924 = vperm.xlu0 %923, %v661
        %v925 = vpop.permute.xlu0 %924
        %928 = vset.pattern.permute.xlu0 0
        %929 = vperm.xlu0 %928, %v663
        %v930 = vpop.permute.xlu0 %929
        %933 = vset.pattern.permute.xlu0 0
        %934 = vperm.xlu0 %933, %v665
        %v935 = vpop.permute.xlu0 %934
        %938 = vset.pattern.permute.xlu0 0
        %939 = vperm.xlu0 %938, %v667
        %v940 = vpop.permute.xlu0 %939
        %v942 = vmul.f32 %v925, %v918
        %v943 = vmul.f32 %v930, %v919
        %v944 = vmul.f32 %v935, %v920
        %v945 = vmul.f32 %v940, %v921
        %v946 = vadd.f32 %v942, %v775
        %v947 = vadd.f32 %v943, %v821
        %v948 = vadd.f32 %v944, %v867
        %v949 = vadd.f32 %v945, %v913
        %950 = vst.msk [vmem:[#allocation4] sm:$0xff] %vm434, %v946
        %951 = vst.msk [vmem:[#allocation4 + $0x8] sm:$0xff] %vm434, %v947
        %952 = vst.msk [vmem:[#allocation4 + $0x10] sm:$0xff] %vm434, %v948
        %953 = vst.msk [vmem:[#allocation4 + $0x18] sm:$0xff] %vm434, %v949
        %954 = vst.msk [vmem:[#allocation2] sm:$0xff] %vm724, %v652
        %955 = vst.msk [vmem:[#allocation2 + $0x8] sm:$0xff] %vm724, %v653
        %956 = vst.msk [vmem:[#allocation2 + $0x10] sm:$0xff] %vm724, %v654
        %957 = vst.msk [vmem:[#allocation2 + $0x18] sm:$0xff] %vm724, %v655
        %p958 = scmp.eq.s32.totalorder %s21, 3
        // Predicated region
        $region160: #{tpu_custom_call.1} parent=142 // pred_check
          %p959 = pneg %p958
        $region161: #{tpu_custom_call.1} parent=142 // pred_check_branch
          %961 = sbr.rel (%p959) target = $region163
        $region162: #{tpu_custom_call.1} parent=142 // pred_region
          %v962 = vld [vmem:[#allocation3] sm:$0xff]
          %v963 = vld [vmem:[#allocation3 + $0x8] sm:$0xff]
          %v964 = vld [vmem:[#allocation3 + $0x10] sm:$0xff]
          %v965 = vld [vmem:[#allocation3 + $0x18] sm:$0xff]
          %v966 = vrcp.pop %v962
          %v967 = vrcp.pop %v963
          %v968 = vrcp.pop %v964
          %v969 = vrcp.pop %v965
          %v970 = vld [vmem:[#allocation4] sm:$0xff]
          %v971 = vld [vmem:[#allocation4 + $0x8] sm:$0xff]
          %v972 = vld [vmem:[#allocation4 + $0x10] sm:$0xff]
          %v973 = vld [vmem:[#allocation4 + $0x18] sm:$0xff]
          %975 = vset.pattern.permute.xlu0 0
          %976 = vperm.xlu0 %975, %v966
          %v977 = vpop.permute.xlu0 %976
          %980 = vset.pattern.permute.xlu0 0
          %981 = vperm.xlu0 %980, %v967
          %v982 = vpop.permute.xlu0 %981
          %985 = vset.pattern.permute.xlu0 0
          %986 = vperm.xlu0 %985, %v968
          %v987 = vpop.permute.xlu0 %986
          %990 = vset.pattern.permute.xlu0 0
          %991 = vperm.xlu0 %990, %v969
          %v992 = vpop.permute.xlu0 %991
          %v994 = vmul.f32 %v970, %v977
          %v995 = vmul.f32 %v971, %v982
          %v996 = vmul.f32 %v972, %v987
          %v997 = vmul.f32 %v973, %v992
          %v998 = vpack.c.bf16 %v994, %v994
          %v999 = vpack.c.bf16 %v995, %v995
          %v1000 = vpack.c.bf16 %v996, %v996
          %v1001 = vpack.c.bf16 %v997, %v997
          %vm1002 = vcmask 60416
          %1003 = vst.msk [vmem:[%s402] sm:$0xf] %vm1002, %v998
          %1004 = vst.msk [vmem:[%s402 + $0x4] sm:$0xf] %vm1002, %v999
          %1005 = vst.msk [vmem:[%s402 + $0x8] sm:$0xf] %vm1002, %v1000
          %1006 = vst.msk [vmem:[%s402 + $0xc] sm:$0xf] %vm1002, %v1001
        $region163: #{tpu_custom_call.1} parent=142 // pred_fallthru
          _
        %s1007 = sand.u32 %s127, 1
        %s1008 = sand.u32 %s127, 1
        %s1009 = smul.addr %s1008, 16
        %s1010 = scalar_lea.vmem [#allocation8], %s1009
        // Predicated region
        $region164: #{tpu_custom_call.1} parent=142 // pred_check
          %p1011 = pneg %p137
        $region165: #{tpu_custom_call.1} parent=142 // pred_check_branch
          %1013 = sbr.rel (%p1011) target = $region167
        $region166: #{tpu_custom_call.1} parent=142 // pred_region
          %s1014 = smul.addr %s19, 16
          %s1015 = sadd.s32 %s20, %s1014
          %s1016 = smul.addr %s1015, 4
          %s1017 = scalar_lea.vmem %s3, %s1016
          // Predicated region
          $region168: #{tpu_custom_call.1} parent=166 // pred_check
            _
          $region169: #{tpu_custom_call.1} parent=166 // pred_check_branch
            %1019 = sbr.rel (0) target = $region171
          $region170: #{tpu_custom_call.1} parent=166 // pred_region
            // Predicated region
            $region172: #{tpu_custom_call.1} parent=170 // pred_check
              _
            $region173: #{tpu_custom_call.1} parent=170 // pred_check_branch
              %1021 = sbr.rel target = $region175
            $region174: #{tpu_custom_call.1} parent=170 // pred_region
              // Predicated region
              $region187: #{tpu_custom_call.1} parent=174 // pred_check
                _
              $region188: #{tpu_custom_call.1} parent=174 // pred_check_branch
                %1043 = sbr.rel (0) target = $region190
              $region189: #{tpu_custom_call.1} parent=174 // pred_region
                loop: start=0, step=1, limit=1
                $region191: #{tpu_custom_call.1} parent=189 // loop_pre_header
                  _
                $region192: #{tpu_custom_call.1} parent=189 // loop_header
                  %s1045 = sphi 0, %s1049
                  %p1046 = scmp.ge.s32.totalorder %s1045, 1
                  %s1050 = sphi %s1010, %s1010
                  %s1051 = sphi %s1017, %s1017
                $region193: #{tpu_custom_call.1} parent=189 // loop_header_branch
                  %1048 = sbr.rel (%p1046) target = $region197
                $region194: #{tpu_custom_call.1} parent=189 // loop_body
                  _
                $region195: #{tpu_custom_call.1} parent=189 // loop_footer
                  %s1049 = sadd.s32 1, %s1045
                $region196: #{tpu_custom_call.1} parent=189 // loop_footer_branch
                  %1044 = sbr.rel target = $region192
                $region197: #{tpu_custom_call.1} parent=189 // loop_exit
                  _
                %s1053 = ssub.s32 16, 1
                loop: start=0, step=1, limit=1
                $region198: #{tpu_custom_call.1} parent=189 // loop_pre_header
                  _
                $region199: #{tpu_custom_call.1} parent=189 // loop_header
                  %s1055 = sphi 0, %s1059
                  %p1056 = scmp.ge.s32.totalorder %s1055, 1
                  %s1060 = sphi %s1010, %s1010
                  %s1061 = sphi %s1017, %s1017
                $region200: #{tpu_custom_call.1} parent=189 // loop_header_branch
                  %1058 = sbr.rel (%p1056) target = $region204
                $region201: #{tpu_custom_call.1} parent=189 // loop_body
                  %v1062 = vld [vmem:[%s1060] sm:%s1053]
                  %1063 = vst [vmem:[%s1061] sm:%s1053] %v1062
                  %v1064 = vld [vmem:[%s1060 + $0x4] sm:%s1053]
                  %1065 = vst [vmem:[%s1061 + $0x10] sm:%s1053] %v1064
                  %v1066 = vld [vmem:[%s1060 + $0x8] sm:%s1053]
                  %1067 = vst [vmem:[%s1061 + $0x20] sm:%s1053] %v1066
                  %v1068 = vld [vmem:[%s1060 + $0xc] sm:%s1053]
                  %1069 = vst [vmem:[%s1061 + $0x30] sm:%s1053] %v1068
                $region202: #{tpu_custom_call.1} parent=189 // loop_footer
                  %s1059 = sadd.s32 1, %s1055
                $region203: #{tpu_custom_call.1} parent=189 // loop_footer_branch
                  %1054 = sbr.rel target = $region199
                $region204: #{tpu_custom_call.1} parent=189 // loop_exit
                  _
              $region190: #{tpu_custom_call.1} parent=174 // pred_fallthru
                _
            $region175: #{tpu_custom_call.1} parent=170 // pred_fallthru
              _
            // Predicated region
            $region176: #{tpu_custom_call.1} parent=170 // pred_check
              _
            $region177: #{tpu_custom_call.1} parent=170 // pred_check_branch
              %1023 = sbr.rel (0) target = $region179
            $region178: #{tpu_custom_call.1} parent=170 // pred_region
              %s1025 = ssub.s32 16, 1
              loop: start=0, step=1, limit=1
              $region180: #{tpu_custom_call.1} parent=178 // loop_pre_header
                _
              $region181: #{tpu_custom_call.1} parent=178 // loop_header
                %s1027 = sphi 0, %s1031
                %p1028 = scmp.ge.s32.totalorder %s1027, 1
                %s1032 = sphi %s1010, %s1010
                %s1033 = sphi %s1017, %s1017
              $region182: #{tpu_custom_call.1} parent=178 // loop_header_branch
                %1030 = sbr.rel (%p1028) target = $region186
              $region183: #{tpu_custom_call.1} parent=178 // loop_body
                %v1034 = vld [vmem:[%s1032] sm:%s1025]
                %1035 = vst [vmem:[%s1033] sm:%s1025] %v1034
                %v1036 = vld [vmem:[%s1032 + $0x4] sm:%s1025]
                %1037 = vst [vmem:[%s1033 + $0x10] sm:%s1025] %v1036
                %v1038 = vld [vmem:[%s1032 + $0x8] sm:%s1025]
                %1039 = vst [vmem:[%s1033 + $0x20] sm:%s1025] %v1038
                %v1040 = vld [vmem:[%s1032 + $0xc] sm:%s1025]
                %1041 = vst [vmem:[%s1033 + $0x30] sm:%s1025] %v1040
              $region184: #{tpu_custom_call.1} parent=178 // loop_footer
                %s1031 = sadd.s32 1, %s1027
              $region185: #{tpu_custom_call.1} parent=178 // loop_footer_branch
                %1026 = sbr.rel target = $region181
              $region186: #{tpu_custom_call.1} parent=178 // loop_exit
                _
            $region179: #{tpu_custom_call.1} parent=170 // pred_fallthru
              _
          $region171: #{tpu_custom_call.1} parent=166 // pred_fallthru
            _
          %1070 = vnop
        $region167: #{tpu_custom_call.1} parent=142 // pred_fallthru
          _
      $region143: #{tpu_custom_call.1} parent=5 // pred_fallthru
        _
      %p1071 = scmp.le.s32.totalorder 2, %s9
      // Predicated region
      $region205: #{tpu_custom_call.1} parent=5 // pred_check
        %p1072 = pneg %p1071
      $region206: #{tpu_custom_call.1} parent=5 // pred_check_branch
        %1074 = sbr.rel (%p1072) target = $region208
      $region207: #{tpu_custom_call.1} parent=5 // pred_region
        %s1075 = ssub.s32 %s9, 2
        // Predicated region
        $region209: #{tpu_custom_call.1} parent=207 // pred_check
          %p1076 = pneg %p143
        $region210: #{tpu_custom_call.1} parent=207 // pred_check_branch
          %1078 = sbr.rel (%p1076) target = $region212
        $region211: #{tpu_custom_call.1} parent=207 // pred_region
          %s1079 = sand.u32 %s128, 1
          %s1080 = sand.u32 %s128, 1
          %s1081 = smul.addr %s1080, 16
          %s1082 = scalar_lea.vmem [#allocation8], %s1081
        $region212: #{tpu_custom_call.1} parent=207 // pred_fallthru
          _
      $region208: #{tpu_custom_call.1} parent=5 // pred_fallthru
        _
    $region6: #{tpu_custom_call.1} parent=1 // loop_footer
      %s13 = sadd.s32 1, %s9
    $region7: #{tpu_custom_call.1} parent=1 // loop_footer_branch
      %8 = sbr.rel target = $region3
    $region8: #{tpu_custom_call.1} parent=1 // loop_exit
      _

</llo_original>
